<compile_context>
chip_gen: v5e
topology: v5e:2x2
jax: 0.10.0
libtpu: 0.0.40
codegen_flags: <defaults>
</compile_context>

<pallas_src>
import jax
import jax.numpy as jnp
from jax.experimental import pallas as pl
from jax.experimental.pallas import tpu as pltpu

IN_DIM = 2
HIDDEN = 5
OUT_DIM = 1
LAYER_DIMS = ((IN_DIM, HIDDEN), (HIDDEN, HIDDEN), (HIDDEN, HIDDEN),
              (HIDDEN, HIDDEN), (HIDDEN, HIDDEN), (HIDDEN, OUT_DIM))
N_PARAMS = sum(fi * fo + fo for (fi, fo) in LAYER_DIMS)  # 141 scalars

LANES = 128             # batch points map onto the 128-wide lane axis
CHUNK_ROWS = 16         # strip-mine granularity: a (16,128) f32 slab = 2 vregs
MAX_TILE_ROWS = 512     # up to 512*128 = 65536 points per grid step
MAX_CHUNKS_PER_TILE = MAX_TILE_ROWS // CHUNK_ROWS
# One grid step costs ~0.35us of pipeline overhead, which is roughly the VALU
# time of ~3 chunks of this kernel (2048 pts * ~230 VALU elem-ops / 4096 per
# cycle ~= 0.12us/chunk).  Used by the tiling cost model below.
STEP_OVERHEAD_CHUNKS = 3.0


def _mlp_kernel(p_ref, x_ref, t_ref, out_ref):
    """p_ref: SMEM (N_PARAMS,) f32 (tanh-folded params);
    x_ref/t_ref/out_ref: VMEM (TILE_ROWS, 128) f32 slabs."""
    # Hoist all 141 parameter scalars out of the chunk loop: one SMEM load
    # each per grid step instead of one per chunk.
    p = [p_ref[i] for i in range(N_PARAMS)]

    n_chunks = x_ref.shape[0] // CHUNK_ROWS  # static: tile_rows % CHUNK_ROWS == 0

    @pl.loop(0, n_chunks)
    def _(c):
        r0 = pl.multiple_of(c * CHUNK_ROWS, CHUNK_ROWS)
        rows = pl.ds(r0, CHUNK_ROWS)
        # Feature-major activations: a Python list of (CHUNK_ROWS, 128) slabs,
        # one per feature.  "concat([x, t], axis=1)" is just these two input
        # features; the tiny contractions (K in {2,5}) are unrolled VPU FMAs,
        # never the MXU.
        h = [x_ref[rows, :], t_ref[rows, :]]
        off = 0
        for li, (fan_in, fan_out) in enumerate(LAYER_DIMS):
            w_off = off                      # row-major: W[i, j] at w_off + i*fan_out + j
            b_off = off + fan_in * fan_out
            off = b_off + fan_out
            last = li == len(LAYER_DIMS) - 1
            new_h = []
            for j in range(fan_out):
                acc = h[0] * p[w_off + j]
                for i in range(1, fan_in):
                    acc = acc + h[i] * p[w_off + i * fan_out + j]
                acc = acc + p[b_off + j]
                if not last:
                    # Params are pre-folded so tanh(acc) here reproduces the
                    # reference sigmoid chain exactly (see fold_params_for_tanh).
                    # tanh runs on the otherwise-idle EUP slot.
                    acc = jnp.tanh(acc)
                new_h.append(acc)
            h = new_h
        out_ref[rows, :] = h[0].astype(out_ref.dtype)


def init_params(key):
    """PyTorch nn.Linear default init: U(-1/sqrt(fan_in), +1/sqrt(fan_in))."""
    params = []
    for (fan_in, fan_out) in LAYER_DIMS:
        key, kw, kb = jax.random.split(key, 3)
        bound = 1.0 / float(fan_in) ** 0.5
        # stored as (fan_in, fan_out) so math is x @ W + b (== torch W.T layout)
        w = jax.random.uniform(kw, (fan_in, fan_out), jnp.float32, -bound, bound)
        b = jax.random.uniform(kb, (fan_out,), jnp.float32, -bound, bound)
        params.append((w, b))
    return params


def fold_params_for_tanh(params):
    """Re-express the sigmoid MLP as a pure-tanh MLP with identical outputs.

    With t_l := tanh(z_l / 2) = 2*sigmoid(z_l) - 1 and a_l = sigmoid(z_l):
      layer 1      : u_1 = a_0 @ (W_1/2) + b_1/2,                     t_1 = tanh(u_1)
      layers 2..5  : u_l = t_{l-1} @ (W_l/4) + (b_l + colsum(W_l)/2)/2, t_l = tanh(u_l)
      output layer : out = t_5 @ (W_6/2) + b_6 + colsum(W_6)/2
    This folds all 0.5*tanh(.)+0.5 affine work into the 141 parameter scalars
    (done once on tiny tensors), so the kernel does only FMAs + tanh.
    """
    folded = []
    n = len(params)
    for l, (w, b) in enumerate(params):
        w = w.astype(jnp.float32)
        b = b.astype(jnp.float32)
        if l == 0:
            v, c = w * 0.5, b * 0.5
        elif l < n - 1:
            v, c = w * 0.25, (b + 0.5 * jnp.sum(w, axis=0)) * 0.5
        else:
            v, c = w * 0.5, b + 0.5 * jnp.sum(w, axis=0)
        folded.append((v, c))
    return folded


def pack_params(params):
    flat = []
    for (w, b) in params:
        flat.append(w.reshape(-1))
        flat.append(b.reshape(-1))
    packed = jnp.concatenate(flat).astype(jnp.float32)
    assert packed.shape == (N_PARAMS,)
    return packed


def _tiling(n):
    """Pick (total_rows, tile_rows).

    tile_rows is a multiple of CHUNK_ROWS, <= MAX_TILE_ROWS.  Chosen with a
    simple compute-bound cost model: padded chunks (wasted VALU work) plus
    ~STEP_OVERHEAD_CHUNKS chunk-equivalents of pipeline overhead per grid
    step.  Additionally force >= 2 grid steps whenever possible so both v7x
    TensorCores get work (costs one extra ~0.35us step on 1-TC v5e/v6e).
    """
    rows_needed = -(-n // LANES)                       # ceil-div
    n_chunks = max(1, -(-rows_needed // CHUNK_ROWS))
    min_steps = 2 if n_chunks >= 2 else 1
    best = None
    for cpt in range(min(MAX_CHUNKS_PER_TILE, n_chunks), 0, -1):
        steps = -(-n_chunks // cpt)
        if steps < min_steps:
            continue
        padded = steps * cpt
        score = padded + STEP_OVERHEAD_CHUNKS * steps
        if best is None or score < best[0]:
            best = (score, cpt, steps)
    _, cpt, steps = best
    tile_rows = cpt * CHUNK_ROWS
    return steps * tile_rows, tile_rows


def net_forward(x, t, params):
    """x: (N,1) f32, t: (N,1) f32 -> (N,1) f32.  Mirrors Net.forward exactly."""
    n = x.shape[0]
    rows, tile_rows = _tiling(n)
    n_pad = rows * LANES

    packed = pack_params(fold_params_for_tanh(params))

    def to_slab(v):  # (N,1) -> lane-dense (rows, 128) with zero padding
        v = v.reshape(-1).astype(jnp.float32)
        v = jnp.pad(v, (0, n_pad - n))
        return v.reshape(rows, LANES)

    x2d = to_slab(x)
    t2d = to_slab(t)

    tiled = pl.BlockSpec((tile_rows, LANES), lambda i: (i, 0))

    out2d = pl.pallas_call(
        _mlp_kernel,
        out_shape=jax.ShapeDtypeStruct((rows, LANES), jnp.float32),
        grid_spec=pltpu.PrefetchScalarGridSpec(
            num_scalar_prefetch=0,
            grid=(rows // tile_rows,),
            in_specs=[
                pl.BlockSpec(memory_space=pltpu.MemorySpace.SMEM),  # packed params
                tiled,   # x feature slab
                tiled,   # t feature slab
            ],
            out_specs=tiled,
        ),
        compiler_params=pltpu.CompilerParams(
            dimension_semantics=("parallel",)),
    )(packed, x2d, t2d)

    return out2d.reshape(-1)[:n].reshape(n, OUT_DIM)


def net_forward_ref(x, t, params):
    """Pure-JAX reference of the same forward pass (literal torch math)."""
    h = jnp.concatenate([x, t], axis=1)
    for idx, (w, b) in enumerate(params):
        h = h @ w + b[None, :]
        if idx < len(params) - 1:
            h = jax.nn.sigmoid(h)
    return h


if __name__ == "__main__":
    key = jax.random.PRNGKey(0)
    kp, kx, kt = jax.random.split(key, 3)

    params = init_params(kp)

    # Small demo batch of (x, t) collocation points.
    N = 16
    x = jax.random.uniform(kx, (N, 1), jnp.float32)
    t = jax.random.uniform(kt, (N, 1), jnp.float32)

    out = net_forward(x, t, params)
    out = jax.block_until_ready(out)
    ref = net_forward_ref(x, t, params)
    assert out.shape == (N, 1)
    assert jnp.allclose(out, ref, atol=1e-5, rtol=1e-5), "mismatch vs reference"

    # Second check: non-aligned N exercising padding, the chunk loop, and a
    # multi-step (>=2, megacore-splittable) grid.
    N2 = 9000
    kx2, kt2 = jax.random.split(kx)
    x2 = jax.random.uniform(kx2, (N2, 1), jnp.float32)
    t2 = jax.random.uniform(kt2, (N2, 1), jnp.float32)
    out2 = jax.block_until_ready(net_forward(x2, t2, params))
    ref2 = net_forward_ref(x2, t2, params)
    assert out2.shape == (N2, 1)
    assert jnp.allclose(out2, ref2, atol=1e-5, rtol=1e-5), "mismatch vs reference (large N)"

    print("KERNEL_OK")
</pallas_src>

<mosaic_0001>
module attributes {stable_mosaic.version = 11 : i64} {
  func.func @_mlp_kernel(%arg0: i32, %arg1: memref<141xf32, #tpu.memory_space<smem>>, %arg2: memref<16x128xf32, #tpu.memory_space<vmem>>, %arg3: memref<16x128xf32, #tpu.memory_space<vmem>>, %arg4: memref<16x128xf32, #tpu.memory_space<vmem>>) attributes {dimension_semantics = [#tpu.dimension_semantics<parallel>], iteration_bounds = array<i64: 1>, scalar_prefetch = 0 : i64, scratch_operands = 0 : i64, tpu.core_type = #tpu.core_type<tc>, window_params = [{transform_indices = @transform_0, window_bounds = array<i64: 141>}, {transform_indices = @transform_1, window_bounds = array<i64: 16, 128>}, {transform_indices = @transform_2, window_bounds = array<i64: 16, 128>}, {transform_indices = @transform_3, window_bounds = array<i64: 16, 128>}]} {
    %c0 = arith.constant 0 : index
    %0 = memref.load %arg1[%c0] : memref<141xf32, #tpu.memory_space<smem>>
    %c1 = arith.constant 1 : index
    %1 = memref.load %arg1[%c1] : memref<141xf32, #tpu.memory_space<smem>>
    %c2 = arith.constant 2 : index
    %2 = memref.load %arg1[%c2] : memref<141xf32, #tpu.memory_space<smem>>
    %c3 = arith.constant 3 : index
    %3 = memref.load %arg1[%c3] : memref<141xf32, #tpu.memory_space<smem>>
    %c4 = arith.constant 4 : index
    %4 = memref.load %arg1[%c4] : memref<141xf32, #tpu.memory_space<smem>>
    %c5 = arith.constant 5 : index
    %5 = memref.load %arg1[%c5] : memref<141xf32, #tpu.memory_space<smem>>
    %c6 = arith.constant 6 : index
    %6 = memref.load %arg1[%c6] : memref<141xf32, #tpu.memory_space<smem>>
    %c7 = arith.constant 7 : index
    %7 = memref.load %arg1[%c7] : memref<141xf32, #tpu.memory_space<smem>>
    %c8 = arith.constant 8 : index
    %8 = memref.load %arg1[%c8] : memref<141xf32, #tpu.memory_space<smem>>
    %c9 = arith.constant 9 : index
    %9 = memref.load %arg1[%c9] : memref<141xf32, #tpu.memory_space<smem>>
    %c10 = arith.constant 10 : index
    %10 = memref.load %arg1[%c10] : memref<141xf32, #tpu.memory_space<smem>>
    %c11 = arith.constant 11 : index
    %11 = memref.load %arg1[%c11] : memref<141xf32, #tpu.memory_space<smem>>
    %c12 = arith.constant 12 : index
    %12 = memref.load %arg1[%c12] : memref<141xf32, #tpu.memory_space<smem>>
    %c13 = arith.constant 13 : index
    %13 = memref.load %arg1[%c13] : memref<141xf32, #tpu.memory_space<smem>>
    %c14 = arith.constant 14 : index
    %14 = memref.load %arg1[%c14] : memref<141xf32, #tpu.memory_space<smem>>
    %c15 = arith.constant 15 : index
    %15 = memref.load %arg1[%c15] : memref<141xf32, #tpu.memory_space<smem>>
    %c16 = arith.constant 16 : index
    %16 = memref.load %arg1[%c16] : memref<141xf32, #tpu.memory_space<smem>>
    %c17 = arith.constant 17 : index
    %17 = memref.load %arg1[%c17] : memref<141xf32, #tpu.memory_space<smem>>
    %c18 = arith.constant 18 : index
    %18 = memref.load %arg1[%c18] : memref<141xf32, #tpu.memory_space<smem>>
    %c19 = arith.constant 19 : index
    %19 = memref.load %arg1[%c19] : memref<141xf32, #tpu.memory_space<smem>>
    %c20 = arith.constant 20 : index
    %20 = memref.load %arg1[%c20] : memref<141xf32, #tpu.memory_space<smem>>
    %c21 = arith.constant 21 : index
    %21 = memref.load %arg1[%c21] : memref<141xf32, #tpu.memory_space<smem>>
    %c22 = arith.constant 22 : index
    %22 = memref.load %arg1[%c22] : memref<141xf32, #tpu.memory_space<smem>>
    %c23 = arith.constant 23 : index
    %23 = memref.load %arg1[%c23] : memref<141xf32, #tpu.memory_space<smem>>
    %c24 = arith.constant 24 : index
    %24 = memref.load %arg1[%c24] : memref<141xf32, #tpu.memory_space<smem>>
    %c25 = arith.constant 25 : index
    %25 = memref.load %arg1[%c25] : memref<141xf32, #tpu.memory_space<smem>>
    %c26 = arith.constant 26 : index
    %26 = memref.load %arg1[%c26] : memref<141xf32, #tpu.memory_space<smem>>
    %c27 = arith.constant 27 : index
    %27 = memref.load %arg1[%c27] : memref<141xf32, #tpu.memory_space<smem>>
    %c28 = arith.constant 28 : index
    %28 = memref.load %arg1[%c28] : memref<141xf32, #tpu.memory_space<smem>>
    %c29 = arith.constant 29 : index
    %29 = memref.load %arg1[%c29] : memref<141xf32, #tpu.memory_space<smem>>
    %c30 = arith.constant 30 : index
    %30 = memref.load %arg1[%c30] : memref<141xf32, #tpu.memory_space<smem>>
    %c31 = arith.constant 31 : index
    %31 = memref.load %arg1[%c31] : memref<141xf32, #tpu.memory_space<smem>>
    %c32 = arith.constant 32 : index
    %32 = memref.load %arg1[%c32] : memref<141xf32, #tpu.memory_space<smem>>
    %c33 = arith.constant 33 : index
    %33 = memref.load %arg1[%c33] : memref<141xf32, #tpu.memory_space<smem>>
    %c34 = arith.constant 34 : index
    %34 = memref.load %arg1[%c34] : memref<141xf32, #tpu.memory_space<smem>>
    %c35 = arith.constant 35 : index
    %35 = memref.load %arg1[%c35] : memref<141xf32, #tpu.memory_space<smem>>
    %c36 = arith.constant 36 : index
    %36 = memref.load %arg1[%c36] : memref<141xf32, #tpu.memory_space<smem>>
    %c37 = arith.constant 37 : index
    %37 = memref.load %arg1[%c37] : memref<141xf32, #tpu.memory_space<smem>>
    %c38 = arith.constant 38 : index
    %38 = memref.load %arg1[%c38] : memref<141xf32, #tpu.memory_space<smem>>
    %c39 = arith.constant 39 : index
    %39 = memref.load %arg1[%c39] : memref<141xf32, #tpu.memory_space<smem>>
    %c40 = arith.constant 40 : index
    %40 = memref.load %arg1[%c40] : memref<141xf32, #tpu.memory_space<smem>>
    %c41 = arith.constant 41 : index
    %41 = memref.load %arg1[%c41] : memref<141xf32, #tpu.memory_space<smem>>
    %c42 = arith.constant 42 : index
    %42 = memref.load %arg1[%c42] : memref<141xf32, #tpu.memory_space<smem>>
    %c43 = arith.constant 43 : index
    %43 = memref.load %arg1[%c43] : memref<141xf32, #tpu.memory_space<smem>>
    %c44 = arith.constant 44 : index
    %44 = memref.load %arg1[%c44] : memref<141xf32, #tpu.memory_space<smem>>
    %c45 = arith.constant 45 : index
    %45 = memref.load %arg1[%c45] : memref<141xf32, #tpu.memory_space<smem>>
    %c46 = arith.constant 46 : index
    %46 = memref.load %arg1[%c46] : memref<141xf32, #tpu.memory_space<smem>>
    %c47 = arith.constant 47 : index
    %47 = memref.load %arg1[%c47] : memref<141xf32, #tpu.memory_space<smem>>
    %c48 = arith.constant 48 : index
    %48 = memref.load %arg1[%c48] : memref<141xf32, #tpu.memory_space<smem>>
    %c49 = arith.constant 49 : index
    %49 = memref.load %arg1[%c49] : memref<141xf32, #tpu.memory_space<smem>>
    %c50 = arith.constant 50 : index
    %50 = memref.load %arg1[%c50] : memref<141xf32, #tpu.memory_space<smem>>
    %c51 = arith.constant 51 : index
    %51 = memref.load %arg1[%c51] : memref<141xf32, #tpu.memory_space<smem>>
    %c52 = arith.constant 52 : index
    %52 = memref.load %arg1[%c52] : memref<141xf32, #tpu.memory_space<smem>>
    %c53 = arith.constant 53 : index
    %53 = memref.load %arg1[%c53] : memref<141xf32, #tpu.memory_space<smem>>
    %c54 = arith.constant 54 : index
    %54 = memref.load %arg1[%c54] : memref<141xf32, #tpu.memory_space<smem>>
    %c55 = arith.constant 55 : index
    %55 = memref.load %arg1[%c55] : memref<141xf32, #tpu.memory_space<smem>>
    %c56 = arith.constant 56 : index
    %56 = memref.load %arg1[%c56] : memref<141xf32, #tpu.memory_space<smem>>
    %c57 = arith.constant 57 : index
    %57 = memref.load %arg1[%c57] : memref<141xf32, #tpu.memory_space<smem>>
    %c58 = arith.constant 58 : index
    %58 = memref.load %arg1[%c58] : memref<141xf32, #tpu.memory_space<smem>>
    %c59 = arith.constant 59 : index
    %59 = memref.load %arg1[%c59] : memref<141xf32, #tpu.memory_space<smem>>
    %c60 = arith.constant 60 : index
    %60 = memref.load %arg1[%c60] : memref<141xf32, #tpu.memory_space<smem>>
    %c61 = arith.constant 61 : index
    %61 = memref.load %arg1[%c61] : memref<141xf32, #tpu.memory_space<smem>>
    %c62 = arith.constant 62 : index
    %62 = memref.load %arg1[%c62] : memref<141xf32, #tpu.memory_space<smem>>
    %c63 = arith.constant 63 : index
    %63 = memref.load %arg1[%c63] : memref<141xf32, #tpu.memory_space<smem>>
    %c64 = arith.constant 64 : index
    %64 = memref.load %arg1[%c64] : memref<141xf32, #tpu.memory_space<smem>>
    %c65 = arith.constant 65 : index
    %65 = memref.load %arg1[%c65] : memref<141xf32, #tpu.memory_space<smem>>
    %c66 = arith.constant 66 : index
    %66 = memref.load %arg1[%c66] : memref<141xf32, #tpu.memory_space<smem>>
    %c67 = arith.constant 67 : index
    %67 = memref.load %arg1[%c67] : memref<141xf32, #tpu.memory_space<smem>>
    %c68 = arith.constant 68 : index
    %68 = memref.load %arg1[%c68] : memref<141xf32, #tpu.memory_space<smem>>
    %c69 = arith.constant 69 : index
    %69 = memref.load %arg1[%c69] : memref<141xf32, #tpu.memory_space<smem>>
    %c70 = arith.constant 70 : index
    %70 = memref.load %arg1[%c70] : memref<141xf32, #tpu.memory_space<smem>>
    %c71 = arith.constant 71 : index
    %71 = memref.load %arg1[%c71] : memref<141xf32, #tpu.memory_space<smem>>
    %c72 = arith.constant 72 : index
    %72 = memref.load %arg1[%c72] : memref<141xf32, #tpu.memory_space<smem>>
    %c73 = arith.constant 73 : index
    %73 = memref.load %arg1[%c73] : memref<141xf32, #tpu.memory_space<smem>>
    %c74 = arith.constant 74 : index
    %74 = memref.load %arg1[%c74] : memref<141xf32, #tpu.memory_space<smem>>
    %c75 = arith.constant 75 : index
    %75 = memref.load %arg1[%c75] : memref<141xf32, #tpu.memory_space<smem>>
    %c76 = arith.constant 76 : index
    %76 = memref.load %arg1[%c76] : memref<141xf32, #tpu.memory_space<smem>>
    %c77 = arith.constant 77 : index
    %77 = memref.load %arg1[%c77] : memref<141xf32, #tpu.memory_space<smem>>
    %c78 = arith.constant 78 : index
    %78 = memref.load %arg1[%c78] : memref<141xf32, #tpu.memory_space<smem>>
    %c79 = arith.constant 79 : index
    %79 = memref.load %arg1[%c79] : memref<141xf32, #tpu.memory_space<smem>>
    %c80 = arith.constant 80 : index
    %80 = memref.load %arg1[%c80] : memref<141xf32, #tpu.memory_space<smem>>
    %c81 = arith.constant 81 : index
    %81 = memref.load %arg1[%c81] : memref<141xf32, #tpu.memory_space<smem>>
    %c82 = arith.constant 82 : index
    %82 = memref.load %arg1[%c82] : memref<141xf32, #tpu.memory_space<smem>>
    %c83 = arith.constant 83 : index
    %83 = memref.load %arg1[%c83] : memref<141xf32, #tpu.memory_space<smem>>
    %c84 = arith.constant 84 : index
    %84 = memref.load %arg1[%c84] : memref<141xf32, #tpu.memory_space<smem>>
    %c85 = arith.constant 85 : index
    %85 = memref.load %arg1[%c85] : memref<141xf32, #tpu.memory_space<smem>>
    %c86 = arith.constant 86 : index
    %86 = memref.load %arg1[%c86] : memref<141xf32, #tpu.memory_space<smem>>
    %c87 = arith.constant 87 : index
    %87 = memref.load %arg1[%c87] : memref<141xf32, #tpu.memory_space<smem>>
    %c88 = arith.constant 88 : index
    %88 = memref.load %arg1[%c88] : memref<141xf32, #tpu.memory_space<smem>>
    %c89 = arith.constant 89 : index
    %89 = memref.load %arg1[%c89] : memref<141xf32, #tpu.memory_space<smem>>
    %c90 = arith.constant 90 : index
    %90 = memref.load %arg1[%c90] : memref<141xf32, #tpu.memory_space<smem>>
    %c91 = arith.constant 91 : index
    %91 = memref.load %arg1[%c91] : memref<141xf32, #tpu.memory_space<smem>>
    %c92 = arith.constant 92 : index
    %92 = memref.load %arg1[%c92] : memref<141xf32, #tpu.memory_space<smem>>
    %c93 = arith.constant 93 : index
    %93 = memref.load %arg1[%c93] : memref<141xf32, #tpu.memory_space<smem>>
    %c94 = arith.constant 94 : index
    %94 = memref.load %arg1[%c94] : memref<141xf32, #tpu.memory_space<smem>>
    %c95 = arith.constant 95 : index
    %95 = memref.load %arg1[%c95] : memref<141xf32, #tpu.memory_space<smem>>
    %c96 = arith.constant 96 : index
    %96 = memref.load %arg1[%c96] : memref<141xf32, #tpu.memory_space<smem>>
    %c97 = arith.constant 97 : index
    %97 = memref.load %arg1[%c97] : memref<141xf32, #tpu.memory_space<smem>>
    %c98 = arith.constant 98 : index
    %98 = memref.load %arg1[%c98] : memref<141xf32, #tpu.memory_space<smem>>
    %c99 = arith.constant 99 : index
    %99 = memref.load %arg1[%c99] : memref<141xf32, #tpu.memory_space<smem>>
    %c100 = arith.constant 100 : index
    %100 = memref.load %arg1[%c100] : memref<141xf32, #tpu.memory_space<smem>>
    %c101 = arith.constant 101 : index
    %101 = memref.load %arg1[%c101] : memref<141xf32, #tpu.memory_space<smem>>
    %c102 = arith.constant 102 : index
    %102 = memref.load %arg1[%c102] : memref<141xf32, #tpu.memory_space<smem>>
    %c103 = arith.constant 103 : index
    %103 = memref.load %arg1[%c103] : memref<141xf32, #tpu.memory_space<smem>>
    %c104 = arith.constant 104 : index
    %104 = memref.load %arg1[%c104] : memref<141xf32, #tpu.memory_space<smem>>
    %c105 = arith.constant 105 : index
    %105 = memref.load %arg1[%c105] : memref<141xf32, #tpu.memory_space<smem>>
    %c106 = arith.constant 106 : index
    %106 = memref.load %arg1[%c106] : memref<141xf32, #tpu.memory_space<smem>>
    %c107 = arith.constant 107 : index
    %107 = memref.load %arg1[%c107] : memref<141xf32, #tpu.memory_space<smem>>
    %c108 = arith.constant 108 : index
    %108 = memref.load %arg1[%c108] : memref<141xf32, #tpu.memory_space<smem>>
    %c109 = arith.constant 109 : index
    %109 = memref.load %arg1[%c109] : memref<141xf32, #tpu.memory_space<smem>>
    %c110 = arith.constant 110 : index
    %110 = memref.load %arg1[%c110] : memref<141xf32, #tpu.memory_space<smem>>
    %c111 = arith.constant 111 : index
    %111 = memref.load %arg1[%c111] : memref<141xf32, #tpu.memory_space<smem>>
    %c112 = arith.constant 112 : index
    %112 = memref.load %arg1[%c112] : memref<141xf32, #tpu.memory_space<smem>>
    %c113 = arith.constant 113 : index
    %113 = memref.load %arg1[%c113] : memref<141xf32, #tpu.memory_space<smem>>
    %c114 = arith.constant 114 : index
    %114 = memref.load %arg1[%c114] : memref<141xf32, #tpu.memory_space<smem>>
    %c115 = arith.constant 115 : index
    %115 = memref.load %arg1[%c115] : memref<141xf32, #tpu.memory_space<smem>>
    %c116 = arith.constant 116 : index
    %116 = memref.load %arg1[%c116] : memref<141xf32, #tpu.memory_space<smem>>
    %c117 = arith.constant 117 : index
    %117 = memref.load %arg1[%c117] : memref<141xf32, #tpu.memory_space<smem>>
    %c118 = arith.constant 118 : index
    %118 = memref.load %arg1[%c118] : memref<141xf32, #tpu.memory_space<smem>>
    %c119 = arith.constant 119 : index
    %119 = memref.load %arg1[%c119] : memref<141xf32, #tpu.memory_space<smem>>
    %c120 = arith.constant 120 : index
    %120 = memref.load %arg1[%c120] : memref<141xf32, #tpu.memory_space<smem>>
    %c121 = arith.constant 121 : index
    %121 = memref.load %arg1[%c121] : memref<141xf32, #tpu.memory_space<smem>>
    %c122 = arith.constant 122 : index
    %122 = memref.load %arg1[%c122] : memref<141xf32, #tpu.memory_space<smem>>
    %c123 = arith.constant 123 : index
    %123 = memref.load %arg1[%c123] : memref<141xf32, #tpu.memory_space<smem>>
    %c124 = arith.constant 124 : index
    %124 = memref.load %arg1[%c124] : memref<141xf32, #tpu.memory_space<smem>>
    %c125 = arith.constant 125 : index
    %125 = memref.load %arg1[%c125] : memref<141xf32, #tpu.memory_space<smem>>
    %c126 = arith.constant 126 : index
    %126 = memref.load %arg1[%c126] : memref<141xf32, #tpu.memory_space<smem>>
    %c127 = arith.constant 127 : index
    %127 = memref.load %arg1[%c127] : memref<141xf32, #tpu.memory_space<smem>>
    %c128 = arith.constant 128 : index
    %128 = memref.load %arg1[%c128] : memref<141xf32, #tpu.memory_space<smem>>
    %c129 = arith.constant 129 : index
    %129 = memref.load %arg1[%c129] : memref<141xf32, #tpu.memory_space<smem>>
    %c130 = arith.constant 130 : index
    %130 = memref.load %arg1[%c130] : memref<141xf32, #tpu.memory_space<smem>>
    %c131 = arith.constant 131 : index
    %131 = memref.load %arg1[%c131] : memref<141xf32, #tpu.memory_space<smem>>
    %c132 = arith.constant 132 : index
    %132 = memref.load %arg1[%c132] : memref<141xf32, #tpu.memory_space<smem>>
    %c133 = arith.constant 133 : index
    %133 = memref.load %arg1[%c133] : memref<141xf32, #tpu.memory_space<smem>>
    %c134 = arith.constant 134 : index
    %134 = memref.load %arg1[%c134] : memref<141xf32, #tpu.memory_space<smem>>
    %c135 = arith.constant 135 : index
    %135 = memref.load %arg1[%c135] : memref<141xf32, #tpu.memory_space<smem>>
    %c136 = arith.constant 136 : index
    %136 = memref.load %arg1[%c136] : memref<141xf32, #tpu.memory_space<smem>>
    %c137 = arith.constant 137 : index
    %137 = memref.load %arg1[%c137] : memref<141xf32, #tpu.memory_space<smem>>
    %c138 = arith.constant 138 : index
    %138 = memref.load %arg1[%c138] : memref<141xf32, #tpu.memory_space<smem>>
    %c139 = arith.constant 139 : index
    %139 = memref.load %arg1[%c139] : memref<141xf32, #tpu.memory_space<smem>>
    %c140 = arith.constant 140 : index
    %140 = memref.load %arg1[%c140] : memref<141xf32, #tpu.memory_space<smem>>
    %c0_i32 = arith.constant 0 : i32
    %c1_i32 = arith.constant 1 : i32
    %141 = arith.muli %c0_i32, %c1_i32 : i32
    %c0_i32_0 = arith.constant 0 : i32
    %142 = arith.addi %c0_i32_0, %141 : i32
    %c16_i32 = arith.constant 16 : i32
    %143 = arith.muli %142, %c16_i32 : i32
    %144 = tpu.assume_multiple %143, 16 : i32
    %145 = arith.index_cast %144 : i32 to index
    %c0_1 = arith.constant 0 : index
    %146 = vector.load %arg2[%145, %c0_1] : memref<16x128xf32, #tpu.memory_space<vmem>>, vector<16x128xf32>
    %147 = arith.index_cast %144 : i32 to index
    %c0_2 = arith.constant 0 : index
    %148 = vector.load %arg3[%147, %c0_2] : memref<16x128xf32, #tpu.memory_space<vmem>>, vector<16x128xf32>
    %149 = vector.broadcast %0 : f32 to vector<16x128xf32>
    %150 = arith.mulf %146, %149 : vector<16x128xf32>
    %151 = vector.broadcast %5 : f32 to vector<16x128xf32>
    %152 = arith.mulf %148, %151 : vector<16x128xf32>
    %153 = arith.addf %150, %152 : vector<16x128xf32>
    %154 = vector.broadcast %10 : f32 to vector<16x128xf32>
    %155 = arith.addf %153, %154 : vector<16x128xf32>
    %156 = math.tanh %155 : vector<16x128xf32>
    %157 = vector.broadcast %1 : f32 to vector<16x128xf32>
    %158 = arith.mulf %146, %157 : vector<16x128xf32>
    %159 = vector.broadcast %6 : f32 to vector<16x128xf32>
    %160 = arith.mulf %148, %159 : vector<16x128xf32>
    %161 = arith.addf %158, %160 : vector<16x128xf32>
    %162 = vector.broadcast %11 : f32 to vector<16x128xf32>
    %163 = arith.addf %161, %162 : vector<16x128xf32>
    %164 = math.tanh %163 : vector<16x128xf32>
    %165 = vector.broadcast %2 : f32 to vector<16x128xf32>
    %166 = arith.mulf %146, %165 : vector<16x128xf32>
    %167 = vector.broadcast %7 : f32 to vector<16x128xf32>
    %168 = arith.mulf %148, %167 : vector<16x128xf32>
    %169 = arith.addf %166, %168 : vector<16x128xf32>
    %170 = vector.broadcast %12 : f32 to vector<16x128xf32>
    %171 = arith.addf %169, %170 : vector<16x128xf32>
    %172 = math.tanh %171 : vector<16x128xf32>
    %173 = vector.broadcast %3 : f32 to vector<16x128xf32>
    %174 = arith.mulf %146, %173 : vector<16x128xf32>
    %175 = vector.broadcast %8 : f32 to vector<16x128xf32>
    %176 = arith.mulf %148, %175 : vector<16x128xf32>
    %177 = arith.addf %174, %176 : vector<16x128xf32>
    %178 = vector.broadcast %13 : f32 to vector<16x128xf32>
    %179 = arith.addf %177, %178 : vector<16x128xf32>
    %180 = math.tanh %179 : vector<16x128xf32>
    %181 = vector.broadcast %4 : f32 to vector<16x128xf32>
    %182 = arith.mulf %146, %181 : vector<16x128xf32>
    %183 = vector.broadcast %9 : f32 to vector<16x128xf32>
    %184 = arith.mulf %148, %183 : vector<16x128xf32>
    %185 = arith.addf %182, %184 : vector<16x128xf32>
    %186 = vector.broadcast %14 : f32 to vector<16x128xf32>
    %187 = arith.addf %185, %186 : vector<16x128xf32>
    %188 = math.tanh %187 : vector<16x128xf32>
    %189 = vector.broadcast %15 : f32 to vector<16x128xf32>
    %190 = arith.mulf %156, %189 : vector<16x128xf32>
    %191 = vector.broadcast %20 : f32 to vector<16x128xf32>
    %192 = arith.mulf %164, %191 : vector<16x128xf32>
    %193 = arith.addf %190, %192 : vector<16x128xf32>
    %194 = vector.broadcast %25 : f32 to vector<16x128xf32>
    %195 = arith.mulf %172, %194 : vector<16x128xf32>
    %196 = arith.addf %193, %195 : vector<16x128xf32>
    %197 = vector.broadcast %30 : f32 to vector<16x128xf32>
    %198 = arith.mulf %180, %197 : vector<16x128xf32>
    %199 = arith.addf %196, %198 : vector<16x128xf32>
    %200 = vector.broadcast %35 : f32 to vector<16x128xf32>
    %201 = arith.mulf %188, %200 : vector<16x128xf32>
    %202 = arith.addf %199, %201 : vector<16x128xf32>
    %203 = vector.broadcast %40 : f32 to vector<16x128xf32>
    %204 = arith.addf %202, %203 : vector<16x128xf32>
    %205 = math.tanh %204 : vector<16x128xf32>
    %206 = vector.broadcast %16 : f32 to vector<16x128xf32>
    %207 = arith.mulf %156, %206 : vector<16x128xf32>
    %208 = vector.broadcast %21 : f32 to vector<16x128xf32>
    %209 = arith.mulf %164, %208 : vector<16x128xf32>
    %210 = arith.addf %207, %209 : vector<16x128xf32>
    %211 = vector.broadcast %26 : f32 to vector<16x128xf32>
    %212 = arith.mulf %172, %211 : vector<16x128xf32>
    %213 = arith.addf %210, %212 : vector<16x128xf32>
    %214 = vector.broadcast %31 : f32 to vector<16x128xf32>
    %215 = arith.mulf %180, %214 : vector<16x128xf32>
    %216 = arith.addf %213, %215 : vector<16x128xf32>
    %217 = vector.broadcast %36 : f32 to vector<16x128xf32>
    %218 = arith.mulf %188, %217 : vector<16x128xf32>
    %219 = arith.addf %216, %218 : vector<16x128xf32>
    %220 = vector.broadcast %41 : f32 to vector<16x128xf32>
    %221 = arith.addf %219, %220 : vector<16x128xf32>
    %222 = math.tanh %221 : vector<16x128xf32>
    %223 = vector.broadcast %17 : f32 to vector<16x128xf32>
    %224 = arith.mulf %156, %223 : vector<16x128xf32>
    %225 = vector.broadcast %22 : f32 to vector<16x128xf32>
    %226 = arith.mulf %164, %225 : vector<16x128xf32>
    %227 = arith.addf %224, %226 : vector<16x128xf32>
    %228 = vector.broadcast %27 : f32 to vector<16x128xf32>
    %229 = arith.mulf %172, %228 : vector<16x128xf32>
    %230 = arith.addf %227, %229 : vector<16x128xf32>
    %231 = vector.broadcast %32 : f32 to vector<16x128xf32>
    %232 = arith.mulf %180, %231 : vector<16x128xf32>
    %233 = arith.addf %230, %232 : vector<16x128xf32>
    %234 = vector.broadcast %37 : f32 to vector<16x128xf32>
    %235 = arith.mulf %188, %234 : vector<16x128xf32>
    %236 = arith.addf %233, %235 : vector<16x128xf32>
    %237 = vector.broadcast %42 : f32 to vector<16x128xf32>
    %238 = arith.addf %236, %237 : vector<16x128xf32>
    %239 = math.tanh %238 : vector<16x128xf32>
    %240 = vector.broadcast %18 : f32 to vector<16x128xf32>
    %241 = arith.mulf %156, %240 : vector<16x128xf32>
    %242 = vector.broadcast %23 : f32 to vector<16x128xf32>
    %243 = arith.mulf %164, %242 : vector<16x128xf32>
    %244 = arith.addf %241, %243 : vector<16x128xf32>
    %245 = vector.broadcast %28 : f32 to vector<16x128xf32>
    %246 = arith.mulf %172, %245 : vector<16x128xf32>
    %247 = arith.addf %244, %246 : vector<16x128xf32>
    %248 = vector.broadcast %33 : f32 to vector<16x128xf32>
    %249 = arith.mulf %180, %248 : vector<16x128xf32>
    %250 = arith.addf %247, %249 : vector<16x128xf32>
    %251 = vector.broadcast %38 : f32 to vector<16x128xf32>
    %252 = arith.mulf %188, %251 : vector<16x128xf32>
    %253 = arith.addf %250, %252 : vector<16x128xf32>
    %254 = vector.broadcast %43 : f32 to vector<16x128xf32>
    %255 = arith.addf %253, %254 : vector<16x128xf32>
    %256 = math.tanh %255 : vector<16x128xf32>
    %257 = vector.broadcast %19 : f32 to vector<16x128xf32>
    %258 = arith.mulf %156, %257 : vector<16x128xf32>
    %259 = vector.broadcast %24 : f32 to vector<16x128xf32>
    %260 = arith.mulf %164, %259 : vector<16x128xf32>
    %261 = arith.addf %258, %260 : vector<16x128xf32>
    %262 = vector.broadcast %29 : f32 to vector<16x128xf32>
    %263 = arith.mulf %172, %262 : vector<16x128xf32>
    %264 = arith.addf %261, %263 : vector<16x128xf32>
    %265 = vector.broadcast %34 : f32 to vector<16x128xf32>
    %266 = arith.mulf %180, %265 : vector<16x128xf32>
    %267 = arith.addf %264, %266 : vector<16x128xf32>
    %268 = vector.broadcast %39 : f32 to vector<16x128xf32>
    %269 = arith.mulf %188, %268 : vector<16x128xf32>
    %270 = arith.addf %267, %269 : vector<16x128xf32>
    %271 = vector.broadcast %44 : f32 to vector<16x128xf32>
    %272 = arith.addf %270, %271 : vector<16x128xf32>
    %273 = math.tanh %272 : vector<16x128xf32>
    %274 = vector.broadcast %45 : f32 to vector<16x128xf32>
    %275 = arith.mulf %205, %274 : vector<16x128xf32>
    %276 = vector.broadcast %50 : f32 to vector<16x128xf32>
    %277 = arith.mulf %222, %276 : vector<16x128xf32>
    %278 = arith.addf %275, %277 : vector<16x128xf32>
    %279 = vector.broadcast %55 : f32 to vector<16x128xf32>
    %280 = arith.mulf %239, %279 : vector<16x128xf32>
    %281 = arith.addf %278, %280 : vector<16x128xf32>
    %282 = vector.broadcast %60 : f32 to vector<16x128xf32>
    %283 = arith.mulf %256, %282 : vector<16x128xf32>
    %284 = arith.addf %281, %283 : vector<16x128xf32>
    %285 = vector.broadcast %65 : f32 to vector<16x128xf32>
    %286 = arith.mulf %273, %285 : vector<16x128xf32>
    %287 = arith.addf %284, %286 : vector<16x128xf32>
    %288 = vector.broadcast %70 : f32 to vector<16x128xf32>
    %289 = arith.addf %287, %288 : vector<16x128xf32>
    %290 = math.tanh %289 : vector<16x128xf32>
    %291 = vector.broadcast %46 : f32 to vector<16x128xf32>
    %292 = arith.mulf %205, %291 : vector<16x128xf32>
    %293 = vector.broadcast %51 : f32 to vector<16x128xf32>
    %294 = arith.mulf %222, %293 : vector<16x128xf32>
    %295 = arith.addf %292, %294 : vector<16x128xf32>
    %296 = vector.broadcast %56 : f32 to vector<16x128xf32>
    %297 = arith.mulf %239, %296 : vector<16x128xf32>
    %298 = arith.addf %295, %297 : vector<16x128xf32>
    %299 = vector.broadcast %61 : f32 to vector<16x128xf32>
    %300 = arith.mulf %256, %299 : vector<16x128xf32>
    %301 = arith.addf %298, %300 : vector<16x128xf32>
    %302 = vector.broadcast %66 : f32 to vector<16x128xf32>
    %303 = arith.mulf %273, %302 : vector<16x128xf32>
    %304 = arith.addf %301, %303 : vector<16x128xf32>
    %305 = vector.broadcast %71 : f32 to vector<16x128xf32>
    %306 = arith.addf %304, %305 : vector<16x128xf32>
    %307 = math.tanh %306 : vector<16x128xf32>
    %308 = vector.broadcast %47 : f32 to vector<16x128xf32>
    %309 = arith.mulf %205, %308 : vector<16x128xf32>
    %310 = vector.broadcast %52 : f32 to vector<16x128xf32>
    %311 = arith.mulf %222, %310 : vector<16x128xf32>
    %312 = arith.addf %309, %311 : vector<16x128xf32>
    %313 = vector.broadcast %57 : f32 to vector<16x128xf32>
    %314 = arith.mulf %239, %313 : vector<16x128xf32>
    %315 = arith.addf %312, %314 : vector<16x128xf32>
    %316 = vector.broadcast %62 : f32 to vector<16x128xf32>
    %317 = arith.mulf %256, %316 : vector<16x128xf32>
    %318 = arith.addf %315, %317 : vector<16x128xf32>
    %319 = vector.broadcast %67 : f32 to vector<16x128xf32>
    %320 = arith.mulf %273, %319 : vector<16x128xf32>
    %321 = arith.addf %318, %320 : vector<16x128xf32>
    %322 = vector.broadcast %72 : f32 to vector<16x128xf32>
    %323 = arith.addf %321, %322 : vector<16x128xf32>
    %324 = math.tanh %323 : vector<16x128xf32>
    %325 = vector.broadcast %48 : f32 to vector<16x128xf32>
    %326 = arith.mulf %205, %325 : vector<16x128xf32>
    %327 = vector.broadcast %53 : f32 to vector<16x128xf32>
    %328 = arith.mulf %222, %327 : vector<16x128xf32>
    %329 = arith.addf %326, %328 : vector<16x128xf32>
    %330 = vector.broadcast %58 : f32 to vector<16x128xf32>
    %331 = arith.mulf %239, %330 : vector<16x128xf32>
    %332 = arith.addf %329, %331 : vector<16x128xf32>
    %333 = vector.broadcast %63 : f32 to vector<16x128xf32>
    %334 = arith.mulf %256, %333 : vector<16x128xf32>
    %335 = arith.addf %332, %334 : vector<16x128xf32>
    %336 = vector.broadcast %68 : f32 to vector<16x128xf32>
    %337 = arith.mulf %273, %336 : vector<16x128xf32>
    %338 = arith.addf %335, %337 : vector<16x128xf32>
    %339 = vector.broadcast %73 : f32 to vector<16x128xf32>
    %340 = arith.addf %338, %339 : vector<16x128xf32>
    %341 = math.tanh %340 : vector<16x128xf32>
    %342 = vector.broadcast %49 : f32 to vector<16x128xf32>
    %343 = arith.mulf %205, %342 : vector<16x128xf32>
    %344 = vector.broadcast %54 : f32 to vector<16x128xf32>
    %345 = arith.mulf %222, %344 : vector<16x128xf32>
    %346 = arith.addf %343, %345 : vector<16x128xf32>
    %347 = vector.broadcast %59 : f32 to vector<16x128xf32>
    %348 = arith.mulf %239, %347 : vector<16x128xf32>
    %349 = arith.addf %346, %348 : vector<16x128xf32>
    %350 = vector.broadcast %64 : f32 to vector<16x128xf32>
    %351 = arith.mulf %256, %350 : vector<16x128xf32>
    %352 = arith.addf %349, %351 : vector<16x128xf32>
    %353 = vector.broadcast %69 : f32 to vector<16x128xf32>
    %354 = arith.mulf %273, %353 : vector<16x128xf32>
    %355 = arith.addf %352, %354 : vector<16x128xf32>
    %356 = vector.broadcast %74 : f32 to vector<16x128xf32>
    %357 = arith.addf %355, %356 : vector<16x128xf32>
    %358 = math.tanh %357 : vector<16x128xf32>
    %359 = vector.broadcast %75 : f32 to vector<16x128xf32>
    %360 = arith.mulf %290, %359 : vector<16x128xf32>
    %361 = vector.broadcast %80 : f32 to vector<16x128xf32>
    %362 = arith.mulf %307, %361 : vector<16x128xf32>
    %363 = arith.addf %360, %362 : vector<16x128xf32>
    %364 = vector.broadcast %85 : f32 to vector<16x128xf32>
    %365 = arith.mulf %324, %364 : vector<16x128xf32>
    %366 = arith.addf %363, %365 : vector<16x128xf32>
    %367 = vector.broadcast %90 : f32 to vector<16x128xf32>
    %368 = arith.mulf %341, %367 : vector<16x128xf32>
    %369 = arith.addf %366, %368 : vector<16x128xf32>
    %370 = vector.broadcast %95 : f32 to vector<16x128xf32>
    %371 = arith.mulf %358, %370 : vector<16x128xf32>
    %372 = arith.addf %369, %371 : vector<16x128xf32>
    %373 = vector.broadcast %100 : f32 to vector<16x128xf32>
    %374 = arith.addf %372, %373 : vector<16x128xf32>
    %375 = math.tanh %374 : vector<16x128xf32>
    %376 = vector.broadcast %76 : f32 to vector<16x128xf32>
    %377 = arith.mulf %290, %376 : vector<16x128xf32>
    %378 = vector.broadcast %81 : f32 to vector<16x128xf32>
    %379 = arith.mulf %307, %378 : vector<16x128xf32>
    %380 = arith.addf %377, %379 : vector<16x128xf32>
    %381 = vector.broadcast %86 : f32 to vector<16x128xf32>
    %382 = arith.mulf %324, %381 : vector<16x128xf32>
    %383 = arith.addf %380, %382 : vector<16x128xf32>
    %384 = vector.broadcast %91 : f32 to vector<16x128xf32>
    %385 = arith.mulf %341, %384 : vector<16x128xf32>
    %386 = arith.addf %383, %385 : vector<16x128xf32>
    %387 = vector.broadcast %96 : f32 to vector<16x128xf32>
    %388 = arith.mulf %358, %387 : vector<16x128xf32>
    %389 = arith.addf %386, %388 : vector<16x128xf32>
    %390 = vector.broadcast %101 : f32 to vector<16x128xf32>
    %391 = arith.addf %389, %390 : vector<16x128xf32>
    %392 = math.tanh %391 : vector<16x128xf32>
    %393 = vector.broadcast %77 : f32 to vector<16x128xf32>
    %394 = arith.mulf %290, %393 : vector<16x128xf32>
    %395 = vector.broadcast %82 : f32 to vector<16x128xf32>
    %396 = arith.mulf %307, %395 : vector<16x128xf32>
    %397 = arith.addf %394, %396 : vector<16x128xf32>
    %398 = vector.broadcast %87 : f32 to vector<16x128xf32>
    %399 = arith.mulf %324, %398 : vector<16x128xf32>
    %400 = arith.addf %397, %399 : vector<16x128xf32>
    %401 = vector.broadcast %92 : f32 to vector<16x128xf32>
    %402 = arith.mulf %341, %401 : vector<16x128xf32>
    %403 = arith.addf %400, %402 : vector<16x128xf32>
    %404 = vector.broadcast %97 : f32 to vector<16x128xf32>
    %405 = arith.mulf %358, %404 : vector<16x128xf32>
    %406 = arith.addf %403, %405 : vector<16x128xf32>
    %407 = vector.broadcast %102 : f32 to vector<16x128xf32>
    %408 = arith.addf %406, %407 : vector<16x128xf32>
    %409 = math.tanh %408 : vector<16x128xf32>
    %410 = vector.broadcast %78 : f32 to vector<16x128xf32>
    %411 = arith.mulf %290, %410 : vector<16x128xf32>
    %412 = vector.broadcast %83 : f32 to vector<16x128xf32>
    %413 = arith.mulf %307, %412 : vector<16x128xf32>
    %414 = arith.addf %411, %413 : vector<16x128xf32>
    %415 = vector.broadcast %88 : f32 to vector<16x128xf32>
    %416 = arith.mulf %324, %415 : vector<16x128xf32>
    %417 = arith.addf %414, %416 : vector<16x128xf32>
    %418 = vector.broadcast %93 : f32 to vector<16x128xf32>
    %419 = arith.mulf %341, %418 : vector<16x128xf32>
    %420 = arith.addf %417, %419 : vector<16x128xf32>
    %421 = vector.broadcast %98 : f32 to vector<16x128xf32>
    %422 = arith.mulf %358, %421 : vector<16x128xf32>
    %423 = arith.addf %420, %422 : vector<16x128xf32>
    %424 = vector.broadcast %103 : f32 to vector<16x128xf32>
    %425 = arith.addf %423, %424 : vector<16x128xf32>
    %426 = math.tanh %425 : vector<16x128xf32>
    %427 = vector.broadcast %79 : f32 to vector<16x128xf32>
    %428 = arith.mulf %290, %427 : vector<16x128xf32>
    %429 = vector.broadcast %84 : f32 to vector<16x128xf32>
    %430 = arith.mulf %307, %429 : vector<16x128xf32>
    %431 = arith.addf %428, %430 : vector<16x128xf32>
    %432 = vector.broadcast %89 : f32 to vector<16x128xf32>
    %433 = arith.mulf %324, %432 : vector<16x128xf32>
    %434 = arith.addf %431, %433 : vector<16x128xf32>
    %435 = vector.broadcast %94 : f32 to vector<16x128xf32>
    %436 = arith.mulf %341, %435 : vector<16x128xf32>
    %437 = arith.addf %434, %436 : vector<16x128xf32>
    %438 = vector.broadcast %99 : f32 to vector<16x128xf32>
    %439 = arith.mulf %358, %438 : vector<16x128xf32>
    %440 = arith.addf %437, %439 : vector<16x128xf32>
    %441 = vector.broadcast %104 : f32 to vector<16x128xf32>
    %442 = arith.addf %440, %441 : vector<16x128xf32>
    %443 = math.tanh %442 : vector<16x128xf32>
    %444 = vector.broadcast %105 : f32 to vector<16x128xf32>
    %445 = arith.mulf %375, %444 : vector<16x128xf32>
    %446 = vector.broadcast %110 : f32 to vector<16x128xf32>
    %447 = arith.mulf %392, %446 : vector<16x128xf32>
    %448 = arith.addf %445, %447 : vector<16x128xf32>
    %449 = vector.broadcast %115 : f32 to vector<16x128xf32>
    %450 = arith.mulf %409, %449 : vector<16x128xf32>
    %451 = arith.addf %448, %450 : vector<16x128xf32>
    %452 = vector.broadcast %120 : f32 to vector<16x128xf32>
    %453 = arith.mulf %426, %452 : vector<16x128xf32>
    %454 = arith.addf %451, %453 : vector<16x128xf32>
    %455 = vector.broadcast %125 : f32 to vector<16x128xf32>
    %456 = arith.mulf %443, %455 : vector<16x128xf32>
    %457 = arith.addf %454, %456 : vector<16x128xf32>
    %458 = vector.broadcast %130 : f32 to vector<16x128xf32>
    %459 = arith.addf %457, %458 : vector<16x128xf32>
    %460 = math.tanh %459 : vector<16x128xf32>
    %461 = vector.broadcast %106 : f32 to vector<16x128xf32>
    %462 = arith.mulf %375, %461 : vector<16x128xf32>
    %463 = vector.broadcast %111 : f32 to vector<16x128xf32>
    %464 = arith.mulf %392, %463 : vector<16x128xf32>
    %465 = arith.addf %462, %464 : vector<16x128xf32>
    %466 = vector.broadcast %116 : f32 to vector<16x128xf32>
    %467 = arith.mulf %409, %466 : vector<16x128xf32>
    %468 = arith.addf %465, %467 : vector<16x128xf32>
    %469 = vector.broadcast %121 : f32 to vector<16x128xf32>
    %470 = arith.mulf %426, %469 : vector<16x128xf32>
    %471 = arith.addf %468, %470 : vector<16x128xf32>
    %472 = vector.broadcast %126 : f32 to vector<16x128xf32>
    %473 = arith.mulf %443, %472 : vector<16x128xf32>
    %474 = arith.addf %471, %473 : vector<16x128xf32>
    %475 = vector.broadcast %131 : f32 to vector<16x128xf32>
    %476 = arith.addf %474, %475 : vector<16x128xf32>
    %477 = math.tanh %476 : vector<16x128xf32>
    %478 = vector.broadcast %107 : f32 to vector<16x128xf32>
    %479 = arith.mulf %375, %478 : vector<16x128xf32>
    %480 = vector.broadcast %112 : f32 to vector<16x128xf32>
    %481 = arith.mulf %392, %480 : vector<16x128xf32>
    %482 = arith.addf %479, %481 : vector<16x128xf32>
    %483 = vector.broadcast %117 : f32 to vector<16x128xf32>
    %484 = arith.mulf %409, %483 : vector<16x128xf32>
    %485 = arith.addf %482, %484 : vector<16x128xf32>
    %486 = vector.broadcast %122 : f32 to vector<16x128xf32>
    %487 = arith.mulf %426, %486 : vector<16x128xf32>
    %488 = arith.addf %485, %487 : vector<16x128xf32>
    %489 = vector.broadcast %127 : f32 to vector<16x128xf32>
    %490 = arith.mulf %443, %489 : vector<16x128xf32>
    %491 = arith.addf %488, %490 : vector<16x128xf32>
    %492 = vector.broadcast %132 : f32 to vector<16x128xf32>
    %493 = arith.addf %491, %492 : vector<16x128xf32>
    %494 = math.tanh %493 : vector<16x128xf32>
    %495 = vector.broadcast %108 : f32 to vector<16x128xf32>
    %496 = arith.mulf %375, %495 : vector<16x128xf32>
    %497 = vector.broadcast %113 : f32 to vector<16x128xf32>
    %498 = arith.mulf %392, %497 : vector<16x128xf32>
    %499 = arith.addf %496, %498 : vector<16x128xf32>
    %500 = vector.broadcast %118 : f32 to vector<16x128xf32>
    %501 = arith.mulf %409, %500 : vector<16x128xf32>
    %502 = arith.addf %499, %501 : vector<16x128xf32>
    %503 = vector.broadcast %123 : f32 to vector<16x128xf32>
    %504 = arith.mulf %426, %503 : vector<16x128xf32>
    %505 = arith.addf %502, %504 : vector<16x128xf32>
    %506 = vector.broadcast %128 : f32 to vector<16x128xf32>
    %507 = arith.mulf %443, %506 : vector<16x128xf32>
    %508 = arith.addf %505, %507 : vector<16x128xf32>
    %509 = vector.broadcast %133 : f32 to vector<16x128xf32>
    %510 = arith.addf %508, %509 : vector<16x128xf32>
    %511 = math.tanh %510 : vector<16x128xf32>
    %512 = vector.broadcast %109 : f32 to vector<16x128xf32>
    %513 = arith.mulf %375, %512 : vector<16x128xf32>
    %514 = vector.broadcast %114 : f32 to vector<16x128xf32>
    %515 = arith.mulf %392, %514 : vector<16x128xf32>
    %516 = arith.addf %513, %515 : vector<16x128xf32>
    %517 = vector.broadcast %119 : f32 to vector<16x128xf32>
    %518 = arith.mulf %409, %517 : vector<16x128xf32>
    %519 = arith.addf %516, %518 : vector<16x128xf32>
    %520 = vector.broadcast %124 : f32 to vector<16x128xf32>
    %521 = arith.mulf %426, %520 : vector<16x128xf32>
    %522 = arith.addf %519, %521 : vector<16x128xf32>
    %523 = vector.broadcast %129 : f32 to vector<16x128xf32>
    %524 = arith.mulf %443, %523 : vector<16x128xf32>
    %525 = arith.addf %522, %524 : vector<16x128xf32>
    %526 = vector.broadcast %134 : f32 to vector<16x128xf32>
    %527 = arith.addf %525, %526 : vector<16x128xf32>
    %528 = math.tanh %527 : vector<16x128xf32>
    %529 = vector.broadcast %135 : f32 to vector<16x128xf32>
    %530 = arith.mulf %460, %529 : vector<16x128xf32>
    %531 = vector.broadcast %136 : f32 to vector<16x128xf32>
    %532 = arith.mulf %477, %531 : vector<16x128xf32>
    %533 = arith.addf %530, %532 : vector<16x128xf32>
    %534 = vector.broadcast %137 : f32 to vector<16x128xf32>
    %535 = arith.mulf %494, %534 : vector<16x128xf32>
    %536 = arith.addf %533, %535 : vector<16x128xf32>
    %537 = vector.broadcast %138 : f32 to vector<16x128xf32>
    %538 = arith.mulf %511, %537 : vector<16x128xf32>
    %539 = arith.addf %536, %538 : vector<16x128xf32>
    %540 = vector.broadcast %139 : f32 to vector<16x128xf32>
    %541 = arith.mulf %528, %540 : vector<16x128xf32>
    %542 = arith.addf %539, %541 : vector<16x128xf32>
    %543 = vector.broadcast %140 : f32 to vector<16x128xf32>
    %544 = arith.addf %542, %543 : vector<16x128xf32>
    %545 = arith.index_cast %144 : i32 to index
    %c0_3 = arith.constant 0 : index
    %546 = vector.load %arg4[%545, %c0_3] : memref<16x128xf32, #tpu.memory_space<vmem>>, vector<16x128xf32>
    tpu.vector_store %arg4[%545, %c0_3], %544 {strides = array<i32>} : memref<16x128xf32, #tpu.memory_space<vmem>>, vector<16x128xf32>,
    %c1_i32_4 = arith.constant 1 : i32
    return
  }
  func.func @transform_0(%arg0: i32) -> i32 {
    %c0_i32 = arith.constant 0 : i32
    %c0_i32_0 = arith.constant 0 : i32
    return %c0_i32 : i32
  }
  func.func @transform_1(%arg0: i32) -> (i32, i32) {
    %c0_i32 = arith.constant 0 : i32
    %c0_i32_0 = arith.constant 0 : i32
    return %arg0, %c0_i32 : i32, i32
  }
  func.func @transform_2(%arg0: i32) -> (i32, i32) {
    %c0_i32 = arith.constant 0 : i32
    %c0_i32_0 = arith.constant 0 : i32
    return %arg0, %c0_i32 : i32, i32
  }
  func.func @transform_3(%arg0: i32) -> (i32, i32) {
    %c0_i32 = arith.constant 0 : i32
    %c0_i32_0 = arith.constant 0 : i32
    return %arg0, %c0_i32 : i32, i32
  }
}

</mosaic_0001>

<llo_original>
// kernel: tpu_custom_call.1
$region0: #{tpu_custom_call.1}
  #allocation0 [shape = 'u32[]', space=smem, size = 0x4, offset = 0x4, fixed_abs, tag = 'smem constant byte address 0x4 - core index']
  #allocation1 [shape = 'u32[72,128]{1,0:T(1,128)}', space=vmem, size = 0x9000, scoped, tag = 'internal scratch']
  %s0 = inlined_call_operand.hbm [shape: f32[141], index: 0, kind: input, shape index: {}]
  %s1 = inlined_call_operand.hbm [shape: f32[16,128], index: 1, kind: input, shape index: {}]
  %s2 = inlined_call_operand.hbm [shape: f32[16,128], index: 2, kind: input, shape index: {}]
  %s3 = inlined_call_operand.hbm [shape: f32[16,128], index: 3, kind: output, shape index: {}]
  %s4 = sld [smem:[#allocation0]]
  $region34: #{tpu_custom_call.1} parent=0
    _
  %s6 = ssub.s32 1, %s4
  %s7 = scalar_select 0, %s6, %s4
  $region1: #{tpu_custom_call.1} parent=0
    #allocation2 [shape = 'u8[1024]{0}', space=smem, size = 0x400, scoped, tag = 'input window, operand 0, single buffered']
    #allocation3 [shape = 's32[1]{0}', space=sflag, size = 0x4, scoped, tag = 'scoped memory for tpu_custom_call.1']
    #allocation4 [shape = 's32[1]{0}', space=sflag, size = 0x4, scoped, tag = 'scoped memory for tpu_custom_call.1']
    #allocation5 [shape = 's32[1]{0}', space=sflag, size = 0x4, scoped, tag = 'scoped memory for tpu_custom_call.1']
    #allocation6 [shape = 'u8[8192]{0}', space=vmem, size = 0x2000, scoped, tag = 'input window, operand 1, single buffered']
    #allocation7 [shape = 'u8[8192]{0}', space=vmem, size = 0x2000, scoped, tag = 'input window, operand 2, single buffered']
    #allocation8 [shape = 's32[1]{0}', space=sflag, size = 0x4, scoped, tag = 'scoped memory for tpu_custom_call.1']
    #allocation9 [shape = 'u8[8192]{0}', space=vmem, size = 0x2000, scoped, tag = 'output window, operand 0, single buffered']
    %8 = vsyncpa [#allocation5], 0
    %9 = vsyncpa [#allocation3], 0
    %10 = vsyncpa [#allocation8], 0
    %11 = vsyncpa [#allocation4], 0
    // Predicated region
    $region2: #{tpu_custom_call.1} parent=1 // pred_check
      _
    $region3: #{tpu_custom_call.1} parent=1 // pred_check_branch
      %13 = sbr.rel (0) target = $region5
    $region4: #{tpu_custom_call.1} parent=1 // pred_region
      %15 = vsyncadd [#allocation5], 0
      %s17 = sshll.u32 %s0, 4
      %s18 = int_to_ptr.hbm [resolvable:$true] %s17
      %20 = dma.hbm_to_smem %s18, 32, [#allocation2], [#allocation5]
    $region5: #{tpu_custom_call.1} parent=1 // pred_fallthru
      _
    // Predicated region
    $region6: #{tpu_custom_call.1} parent=1 // pred_check
      _
    $region7: #{tpu_custom_call.1} parent=1 // pred_check_branch
      %22 = sbr.rel (0) target = $region9
    $region8: #{tpu_custom_call.1} parent=1 // pred_region
      %24 = vsyncadd [#allocation3], 0
      %s25 = sshll.u32 %s1, 4
      %s26 = int_to_ptr.hbm [resolvable:$true] %s25
      %s27 = sshll.u32 [#allocation6], 4
      %s28 = int_to_ptr.vmem [resolvable:$true] %s27
      %33 = dma.hbm_to_vmem [thread:$0]  %s26, 256, %s28, [#allocation3], 128, 128, 8
    $region9: #{tpu_custom_call.1} parent=1 // pred_fallthru
      _
    // Predicated region
    $region10: #{tpu_custom_call.1} parent=1 // pred_check
      _
    $region11: #{tpu_custom_call.1} parent=1 // pred_check_branch
      %35 = sbr.rel (0) target = $region13
    $region12: #{tpu_custom_call.1} parent=1 // pred_region
      %37 = vsyncadd [#allocation8], 0
      %s38 = sshll.u32 %s2, 4
      %s39 = int_to_ptr.hbm [resolvable:$true] %s38
      %s40 = sshll.u32 [#allocation7], 4
      %s41 = int_to_ptr.vmem [resolvable:$true] %s40
      %46 = dma.hbm_to_vmem [thread:$0]  %s39, 256, %s41, [#allocation8], 128, 128, 8
    $region13: #{tpu_custom_call.1} parent=1 // pred_fallthru
      _
    // Predicated region
    $region14: #{tpu_custom_call.1} parent=1 // pred_check
      _
    $region15: #{tpu_custom_call.1} parent=1 // pred_check_branch
      %48 = sbr.rel (0) target = $region17
    $region16: #{tpu_custom_call.1} parent=1 // pred_region
      %50 = dma.done [#allocation5], 32
    $region17: #{tpu_custom_call.1} parent=1 // pred_fallthru
      _
    // Predicated region
    $region18: #{tpu_custom_call.1} parent=1 // pred_check
      _
    $region19: #{tpu_custom_call.1} parent=1 // pred_check_branch
      %52 = sbr.rel (0) target = $region21
    $region20: #{tpu_custom_call.1} parent=1 // pred_region
      %54 = dma.done [#allocation3], 256
    $region21: #{tpu_custom_call.1} parent=1 // pred_fallthru
      _
    // Predicated region
    $region22: #{tpu_custom_call.1} parent=1 // pred_check
      _
    $region23: #{tpu_custom_call.1} parent=1 // pred_check_branch
      %56 = sbr.rel (0) target = $region25
    $region24: #{tpu_custom_call.1} parent=1 // pred_region
      %58 = dma.done [#allocation8], 256
    $region25: #{tpu_custom_call.1} parent=1 // pred_fallthru
      _
    %59 = sfence
    %s60 = sld [smem:[#allocation2]]
    %s61 = sld [smem:[#allocation2 + $0x1]]
    %s62 = sld [smem:[#allocation2 + $0x2]]
    %s63 = sld [smem:[#allocation2 + $0x3]]
    %s64 = sld [smem:[#allocation2 + $0x4]]
    %s65 = sld [smem:[#allocation2 + $0x5]]
    %s66 = sld [smem:[#allocation2 + $0x6]]
    %s67 = sld [smem:[#allocation2 + $0x7]]
    %s68 = sld [smem:[#allocation2 + $0x8]]
    %s69 = sld [smem:[#allocation2 + $0x9]]
    %s70 = sld [smem:[#allocation2 + $0xa]]
    %s71 = sld [smem:[#allocation2 + $0xb]]
    %s72 = sld [smem:[#allocation2 + $0xc]]
    %s73 = sld [smem:[#allocation2 + $0xd]]
    %s74 = sld [smem:[#allocation2 + $0xe]]
    %s75 = sld [smem:[#allocation2 + $0xf]]
    %s76 = sld [smem:[#allocation2 + $0x10]]
    %s77 = sld [smem:[#allocation2 + $0x11]]
    %s78 = sld [smem:[#allocation2 + $0x12]]
    %s79 = sld [smem:[#allocation2 + $0x13]]
    %s80 = sld [smem:[#allocation2 + $0x14]]
    %s81 = sld [smem:[#allocation2 + $0x15]]
    %s82 = sld [smem:[#allocation2 + $0x16]]
    %s83 = sld [smem:[#allocation2 + $0x17]]
    %s84 = sld [smem:[#allocation2 + $0x18]]
    %s85 = sld [smem:[#allocation2 + $0x19]]
    %s86 = sld [smem:[#allocation2 + $0x1a]]
    %s87 = sld [smem:[#allocation2 + $0x1b]]
    %s88 = sld [smem:[#allocation2 + $0x1c]]
    %s89 = sld [smem:[#allocation2 + $0x1d]]
    %s90 = sld [smem:[#allocation2 + $0x1e]]
    %s91 = sld [smem:[#allocation2 + $0x1f]]
    %s92 = sld [smem:[#allocation2 + $0x20]]
    %s93 = sld [smem:[#allocation2 + $0x21]]
    %s94 = sld [smem:[#allocation2 + $0x22]]
    %s95 = sld [smem:[#allocation2 + $0x23]]
    %s96 = sld [smem:[#allocation2 + $0x24]]
    %s97 = sld [smem:[#allocation2 + $0x25]]
    %s98 = sld [smem:[#allocation2 + $0x26]]
    %s99 = sld [smem:[#allocation2 + $0x27]]
    %s100 = sld [smem:[#allocation2 + $0x28]]
    %s101 = sld [smem:[#allocation2 + $0x29]]
    %s102 = sld [smem:[#allocation2 + $0x2a]]
    %s103 = sld [smem:[#allocation2 + $0x2b]]
    %s104 = sld [smem:[#allocation2 + $0x2c]]
    %s105 = sld [smem:[#allocation2 + $0x2d]]
    %s106 = sld [smem:[#allocation2 + $0x2e]]
    %s107 = sld [smem:[#allocation2 + $0x2f]]
    %s108 = sld [smem:[#allocation2 + $0x30]]
    %s109 = sld [smem:[#allocation2 + $0x31]]
    %s110 = sld [smem:[#allocation2 + $0x32]]
    %s111 = sld [smem:[#allocation2 + $0x33]]
    %s112 = sld [smem:[#allocation2 + $0x34]]
    %s113 = sld [smem:[#allocation2 + $0x35]]
    %s114 = sld [smem:[#allocation2 + $0x36]]
    %s115 = sld [smem:[#allocation2 + $0x37]]
    %s116 = sld [smem:[#allocation2 + $0x38]]
    %s117 = sld [smem:[#allocation2 + $0x39]]
    %s118 = sld [smem:[#allocation2 + $0x3a]]
    %s119 = sld [smem:[#allocation2 + $0x3b]]
    %s120 = sld [smem:[#allocation2 + $0x3c]]
    %s121 = sld [smem:[#allocation2 + $0x3d]]
    %s122 = sld [smem:[#allocation2 + $0x3e]]
    %s123 = sld [smem:[#allocation2 + $0x3f]]
    %s124 = sld [smem:[#allocation2 + $0x40]]
    %s125 = sld [smem:[#allocation2 + $0x41]]
    %s126 = sld [smem:[#allocation2 + $0x42]]
    %s127 = sld [smem:[#allocation2 + $0x43]]
    %s128 = sld [smem:[#allocation2 + $0x44]]
    %s129 = sld [smem:[#allocation2 + $0x45]]
    %s130 = sld [smem:[#allocation2 + $0x46]]
    %s131 = sld [smem:[#allocation2 + $0x47]]
    %s132 = sld [smem:[#allocation2 + $0x48]]
    %s133 = sld [smem:[#allocation2 + $0x49]]
    %s134 = sld [smem:[#allocation2 + $0x4a]]
    %s135 = sld [smem:[#allocation2 + $0x4b]]
    %s136 = sld [smem:[#allocation2 + $0x4c]]
    %s137 = sld [smem:[#allocation2 + $0x4d]]
    %s138 = sld [smem:[#allocation2 + $0x4e]]
    %s139 = sld [smem:[#allocation2 + $0x4f]]
    %s140 = sld [smem:[#allocation2 + $0x50]]
    %s141 = sld [smem:[#allocation2 + $0x51]]
    %s142 = sld [smem:[#allocation2 + $0x52]]
    %s143 = sld [smem:[#allocation2 + $0x53]]
    %s144 = sld [smem:[#allocation2 + $0x54]]
    %s145 = sld [smem:[#allocation2 + $0x55]]
    %s146 = sld [smem:[#allocation2 + $0x56]]
    %s147 = sld [smem:[#allocation2 + $0x57]]
    %s148 = sld [smem:[#allocation2 + $0x58]]
    %s149 = sld [smem:[#allocation2 + $0x59]]
    %s150 = sld [smem:[#allocation2 + $0x5a]]
    %s151 = sld [smem:[#allocation2 + $0x5b]]
    %s152 = sld [smem:[#allocation2 + $0x5c]]
    %s153 = sld [smem:[#allocation2 + $0x5d]]
    %s154 = sld [smem:[#allocation2 + $0x5e]]
    %s155 = sld [smem:[#allocation2 + $0x5f]]
    %s156 = sld [smem:[#allocation2 + $0x60]]
    %s157 = sld [smem:[#allocation2 + $0x61]]
    %s158 = sld [smem:[#allocation2 + $0x62]]
    %s159 = sld [smem:[#allocation2 + $0x63]]
    %s160 = sld [smem:[#allocation2 + $0x64]]
    %s161 = sld [smem:[#allocation2 + $0x65]]
    %s162 = sld [smem:[#allocation2 + $0x66]]
    %s163 = sld [smem:[#allocation2 + $0x67]]
    %s164 = sld [smem:[#allocation2 + $0x68]]
    %s165 = sld [smem:[#allocation2 + $0x69]]
    %s166 = sld [smem:[#allocation2 + $0x6a]]
    %s167 = sld [smem:[#allocation2 + $0x6b]]
    %s168 = sld [smem:[#allocation2 + $0x6c]]
    %s169 = sld [smem:[#allocation2 + $0x6d]]
    %s170 = sld [smem:[#allocation2 + $0x6e]]
    %s171 = sld [smem:[#allocation2 + $0x6f]]
    %s172 = sld [smem:[#allocation2 + $0x70]]
    %s173 = sld [smem:[#allocation2 + $0x71]]
    %s174 = sld [smem:[#allocation2 + $0x72]]
    %s175 = sld [smem:[#allocation2 + $0x73]]
    %s176 = sld [smem:[#allocation2 + $0x74]]
    %s177 = sld [smem:[#allocation2 + $0x75]]
    %s178 = sld [smem:[#allocation2 + $0x76]]
    %s179 = sld [smem:[#allocation2 + $0x77]]
    %s180 = sld [smem:[#allocation2 + $0x78]]
    %s181 = sld [smem:[#allocation2 + $0x79]]
    %s182 = sld [smem:[#allocation2 + $0x7a]]
    %s183 = sld [smem:[#allocation2 + $0x7b]]
    %s184 = sld [smem:[#allocation2 + $0x7c]]
    %s185 = sld [smem:[#allocation2 + $0x7d]]
    %s186 = sld [smem:[#allocation2 + $0x7e]]
    %s187 = sld [smem:[#allocation2 + $0x7f]]
    %s188 = sld [smem:[#allocation2 + $0x80]]
    %s189 = sld [smem:[#allocation2 + $0x81]]
    %s190 = sld [smem:[#allocation2 + $0x82]]
    %s191 = sld [smem:[#allocation2 + $0x83]]
    %s192 = sld [smem:[#allocation2 + $0x84]]
    %s193 = sld [smem:[#allocation2 + $0x85]]
    %s194 = sld [smem:[#allocation2 + $0x86]]
    %s195 = sld [smem:[#allocation2 + $0x87]]
    %s196 = sld [smem:[#allocation2 + $0x88]]
    %s197 = sld [smem:[#allocation2 + $0x89]]
    %s198 = sld [smem:[#allocation2 + $0x8a]]
    %s199 = sld [smem:[#allocation2 + $0x8b]]
    %s200 = sld [smem:[#allocation2 + $0x8c]]
    %v201 = vld [vmem:[#allocation6] sm:$0xff]
    %v202 = vld [vmem:[#allocation6 + $0x8] sm:$0xff]
    %v203 = vld [vmem:[#allocation7] sm:$0xff]
    %v204 = vld [vmem:[#allocation7 + $0x8] sm:$0xff]
    %v205 = vstv %s60
    %v206 = vmul.f32 %v201, %v205
    %v207 = vmul.f32 %v202, %v205
    %v208 = vstv %s65
    %v209 = vmul.f32 %v203, %v208
    %v210 = vmul.f32 %v204, %v208
    %v211 = vadd.f32 %v206, %v209
    %v212 = vadd.f32 %v207, %v210
    %v213 = vstv %s70
    %v214 = vadd.f32 %v211, %v213
    %v215 = vadd.f32 %v212, %v213
    %v216 = vtanh.pop %v214
    %v217 = vtanh.pop %v215
    %v218 = vstv %s61
    %v219 = vmul.f32 %v201, %v218
    %v220 = vmul.f32 %v202, %v218
    %v221 = vstv %s66
    %v222 = vmul.f32 %v203, %v221
    %v223 = vmul.f32 %v204, %v221
    %v224 = vadd.f32 %v219, %v222
    %v225 = vadd.f32 %v220, %v223
    %v226 = vstv %s71
    %v227 = vadd.f32 %v224, %v226
    %v228 = vadd.f32 %v225, %v226
    %v229 = vtanh.pop %v227
    %v230 = vtanh.pop %v228
    %v231 = vstv %s62
    %v232 = vmul.f32 %v201, %v231
    %v233 = vmul.f32 %v202, %v231
    %v234 = vstv %s67
    %v235 = vmul.f32 %v203, %v234
    %v236 = vmul.f32 %v204, %v234
    %v237 = vadd.f32 %v232, %v235
    %v238 = vadd.f32 %v233, %v236
    %v239 = vstv %s72
    %v240 = vadd.f32 %v237, %v239
    %v241 = vadd.f32 %v238, %v239
    %v242 = vtanh.pop %v240
    %v243 = vtanh.pop %v241
    %v244 = vstv %s63
    %v245 = vmul.f32 %v201, %v244
    %v246 = vmul.f32 %v202, %v244
    %v247 = vstv %s68
    %v248 = vmul.f32 %v203, %v247
    %v249 = vmul.f32 %v204, %v247
    %v250 = vadd.f32 %v245, %v248
    %v251 = vadd.f32 %v246, %v249
    %v252 = vstv %s73
    %v253 = vadd.f32 %v250, %v252
    %v254 = vadd.f32 %v251, %v252
    %v255 = vtanh.pop %v253
    %v256 = vtanh.pop %v254
    %v257 = vstv %s64
    %v258 = vmul.f32 %v201, %v257
    %v259 = vmul.f32 %v202, %v257
    %v260 = vstv %s69
    %v261 = vmul.f32 %v203, %v260
    %v262 = vmul.f32 %v204, %v260
    %v263 = vadd.f32 %v258, %v261
    %v264 = vadd.f32 %v259, %v262
    %v265 = vstv %s74
    %v266 = vadd.f32 %v263, %v265
    %v267 = vadd.f32 %v264, %v265
    %v268 = vtanh.pop %v266
    %v269 = vtanh.pop %v267
    %v270 = vstv %s75
    %v271 = vmul.f32 %v216, %v270
    %v272 = vmul.f32 %v217, %v270
    %v273 = vstv %s80
    %v274 = vmul.f32 %v229, %v273
    %v275 = vmul.f32 %v230, %v273
    %v276 = vadd.f32 %v271, %v274
    %v277 = vadd.f32 %v272, %v275
    %v278 = vstv %s85
    %v279 = vmul.f32 %v242, %v278
    %v280 = vmul.f32 %v243, %v278
    %v281 = vadd.f32 %v276, %v279
    %v282 = vadd.f32 %v277, %v280
    %v283 = vstv %s90
    %v284 = vmul.f32 %v255, %v283
    %v285 = vmul.f32 %v256, %v283
    %v286 = vadd.f32 %v281, %v284
    %v287 = vadd.f32 %v282, %v285
    %v288 = vstv %s95
    %v289 = vmul.f32 %v268, %v288
    %v290 = vmul.f32 %v269, %v288
    %v291 = vadd.f32 %v286, %v289
    %v292 = vadd.f32 %v287, %v290
    %v293 = vstv %s100
    %v294 = vadd.f32 %v291, %v293
    %v295 = vadd.f32 %v292, %v293
    %v296 = vtanh.pop %v294
    %v297 = vtanh.pop %v295
    %v298 = vstv %s76
    %v299 = vmul.f32 %v216, %v298
    %v300 = vmul.f32 %v217, %v298
    %v301 = vstv %s81
    %v302 = vmul.f32 %v229, %v301
    %v303 = vmul.f32 %v230, %v301
    %v304 = vadd.f32 %v299, %v302
    %v305 = vadd.f32 %v300, %v303
    %v306 = vstv %s86
    %v307 = vmul.f32 %v242, %v306
    %v308 = vmul.f32 %v243, %v306
    %v309 = vadd.f32 %v304, %v307
    %v310 = vadd.f32 %v305, %v308
    %v311 = vstv %s91
    %v312 = vmul.f32 %v255, %v311
    %v313 = vmul.f32 %v256, %v311
    %v314 = vadd.f32 %v309, %v312
    %v315 = vadd.f32 %v310, %v313
    %v316 = vstv %s96
    %v317 = vmul.f32 %v268, %v316
    %v318 = vmul.f32 %v269, %v316
    %v319 = vadd.f32 %v314, %v317
    %v320 = vadd.f32 %v315, %v318
    %v321 = vstv %s101
    %v322 = vadd.f32 %v319, %v321
    %v323 = vadd.f32 %v320, %v321
    %v324 = vtanh.pop %v322
    %v325 = vtanh.pop %v323
    %v326 = vstv %s77
    %v327 = vmul.f32 %v216, %v326
    %v328 = vmul.f32 %v217, %v326
    %v329 = vstv %s82
    %v330 = vmul.f32 %v229, %v329
    %v331 = vmul.f32 %v230, %v329
    %v332 = vadd.f32 %v327, %v330
    %v333 = vadd.f32 %v328, %v331
    %v334 = vstv %s87
    %v335 = vmul.f32 %v242, %v334
    %v336 = vmul.f32 %v243, %v334
    %v337 = vadd.f32 %v332, %v335
    %v338 = vadd.f32 %v333, %v336
    %v339 = vstv %s92
    %v340 = vmul.f32 %v255, %v339
    %v341 = vmul.f32 %v256, %v339
    %v342 = vadd.f32 %v337, %v340
    %v343 = vadd.f32 %v338, %v341
    %v344 = vstv %s97
    %v345 = vmul.f32 %v268, %v344
    %v346 = vmul.f32 %v269, %v344
    %v347 = vadd.f32 %v342, %v345
    %v348 = vadd.f32 %v343, %v346
    %v349 = vstv %s102
    %v350 = vadd.f32 %v347, %v349
    %v351 = vadd.f32 %v348, %v349
    %v352 = vtanh.pop %v350
    %v353 = vtanh.pop %v351
    %v354 = vstv %s78
    %v355 = vmul.f32 %v216, %v354
    %v356 = vmul.f32 %v217, %v354
    %v357 = vstv %s83
    %v358 = vmul.f32 %v229, %v357
    %v359 = vmul.f32 %v230, %v357
    %v360 = vadd.f32 %v355, %v358
    %v361 = vadd.f32 %v356, %v359
    %v362 = vstv %s88
    %v363 = vmul.f32 %v242, %v362
    %v364 = vmul.f32 %v243, %v362
    %v365 = vadd.f32 %v360, %v363
    %v366 = vadd.f32 %v361, %v364
    %v367 = vstv %s93
    %v368 = vmul.f32 %v255, %v367
    %v369 = vmul.f32 %v256, %v367
    %v370 = vadd.f32 %v365, %v368
    %v371 = vadd.f32 %v366, %v369
    %v372 = vstv %s98
    %v373 = vmul.f32 %v268, %v372
    %v374 = vmul.f32 %v269, %v372
    %v375 = vadd.f32 %v370, %v373
    %v376 = vadd.f32 %v371, %v374
    %v377 = vstv %s103
    %v378 = vadd.f32 %v375, %v377
    %v379 = vadd.f32 %v376, %v377
    %v380 = vtanh.pop %v378
    %v381 = vtanh.pop %v379
    %v382 = vstv %s79
    %v383 = vmul.f32 %v216, %v382
    %v384 = vmul.f32 %v217, %v382
    %v385 = vstv %s84
    %v386 = vmul.f32 %v229, %v385
    %v387 = vmul.f32 %v230, %v385
    %v388 = vadd.f32 %v383, %v386
    %v389 = vadd.f32 %v384, %v387
    %v390 = vstv %s89
    %v391 = vmul.f32 %v242, %v390
    %v392 = vmul.f32 %v243, %v390
    %v393 = vadd.f32 %v388, %v391
    %v394 = vadd.f32 %v389, %v392
    %v395 = vstv %s94
    %v396 = vmul.f32 %v255, %v395
    %v397 = vmul.f32 %v256, %v395
    %v398 = vadd.f32 %v393, %v396
    %v399 = vadd.f32 %v394, %v397
    %v400 = vstv %s99
    %v401 = vmul.f32 %v268, %v400
    %v402 = vmul.f32 %v269, %v400
    %v403 = vadd.f32 %v398, %v401
    %v404 = vadd.f32 %v399, %v402
    %v405 = vstv %s104
    %v406 = vadd.f32 %v403, %v405
    %v407 = vadd.f32 %v404, %v405
    %v408 = vtanh.pop %v406
    %v409 = vtanh.pop %v407
    %v410 = vstv %s105
    %v411 = vmul.f32 %v296, %v410
    %v412 = vmul.f32 %v297, %v410
    %v413 = vstv %s110
    %v414 = vmul.f32 %v324, %v413
    %v415 = vmul.f32 %v325, %v413
    %v416 = vadd.f32 %v411, %v414
    %v417 = vadd.f32 %v412, %v415
    %v418 = vstv %s115
    %v419 = vmul.f32 %v352, %v418
    %v420 = vmul.f32 %v353, %v418
    %v421 = vadd.f32 %v416, %v419
    %v422 = vadd.f32 %v417, %v420
    %v423 = vstv %s120
    %v424 = vmul.f32 %v380, %v423
    %v425 = vmul.f32 %v381, %v423
    %v426 = vadd.f32 %v421, %v424
    %v427 = vadd.f32 %v422, %v425
    %v428 = vstv %s125
    %v429 = vmul.f32 %v408, %v428
    %v430 = vmul.f32 %v409, %v428
    %v431 = vadd.f32 %v426, %v429
    %v432 = vadd.f32 %v427, %v430
    %v433 = vstv %s130
    %v434 = vadd.f32 %v431, %v433
    %v435 = vadd.f32 %v432, %v433
    %v436 = vtanh.pop %v434
    %v437 = vtanh.pop %v435
    %v438 = vstv %s106
    %v439 = vmul.f32 %v296, %v438
    %v440 = vmul.f32 %v297, %v438
    %v441 = vstv %s111
    %v442 = vmul.f32 %v324, %v441
    %v443 = vmul.f32 %v325, %v441
    %v444 = vadd.f32 %v439, %v442
    %v445 = vadd.f32 %v440, %v443
    %v446 = vstv %s116
    %v447 = vmul.f32 %v352, %v446
    %v448 = vmul.f32 %v353, %v446
    %v449 = vadd.f32 %v444, %v447
    %v450 = vadd.f32 %v445, %v448
    %v451 = vstv %s121
    %v452 = vmul.f32 %v380, %v451
    %v453 = vmul.f32 %v381, %v451
    %v454 = vadd.f32 %v449, %v452
    %v455 = vadd.f32 %v450, %v453
    %v456 = vstv %s126
    %v457 = vmul.f32 %v408, %v456
    %v458 = vmul.f32 %v409, %v456
    %v459 = vadd.f32 %v454, %v457
    %v460 = vadd.f32 %v455, %v458
    %v461 = vstv %s131
    %v462 = vadd.f32 %v459, %v461
    %v463 = vadd.f32 %v460, %v461
    %v464 = vtanh.pop %v462
    %v465 = vtanh.pop %v463
    %v466 = vstv %s107
    %v467 = vmul.f32 %v296, %v466
    %v468 = vmul.f32 %v297, %v466
    %v469 = vstv %s112
    %v470 = vmul.f32 %v324, %v469
    %v471 = vmul.f32 %v325, %v469
    %v472 = vadd.f32 %v467, %v470
    %v473 = vadd.f32 %v468, %v471
    %v474 = vstv %s117
    %v475 = vmul.f32 %v352, %v474
    %v476 = vmul.f32 %v353, %v474
    %v477 = vadd.f32 %v472, %v475
    %v478 = vadd.f32 %v473, %v476
    %v479 = vstv %s122
    %v480 = vmul.f32 %v380, %v479
    %v481 = vmul.f32 %v381, %v479
    %v482 = vadd.f32 %v477, %v480
    %v483 = vadd.f32 %v478, %v481
    %v484 = vstv %s127
    %v485 = vmul.f32 %v408, %v484
    %v486 = vmul.f32 %v409, %v484
    %v487 = vadd.f32 %v482, %v485
    %v488 = vadd.f32 %v483, %v486
    %v489 = vstv %s132
    %v490 = vadd.f32 %v487, %v489
    %v491 = vadd.f32 %v488, %v489
    %v492 = vtanh.pop %v490
    %v493 = vtanh.pop %v491
    %v494 = vstv %s108
    %v495 = vmul.f32 %v296, %v494
    %v496 = vmul.f32 %v297, %v494
    %v497 = vstv %s113
    %v498 = vmul.f32 %v324, %v497
    %v499 = vmul.f32 %v325, %v497
    %v500 = vadd.f32 %v495, %v498
    %v501 = vadd.f32 %v496, %v499
    %v502 = vstv %s118
    %v503 = vmul.f32 %v352, %v502
    %v504 = vmul.f32 %v353, %v502
    %v505 = vadd.f32 %v500, %v503
    %v506 = vadd.f32 %v501, %v504
    %v507 = vstv %s123
    %v508 = vmul.f32 %v380, %v507
    %v509 = vmul.f32 %v381, %v507
    %v510 = vadd.f32 %v505, %v508
    %v511 = vadd.f32 %v506, %v509
    %v512 = vstv %s128
    %v513 = vmul.f32 %v408, %v512
    %v514 = vmul.f32 %v409, %v512
    %v515 = vadd.f32 %v510, %v513
    %v516 = vadd.f32 %v511, %v514
    %v517 = vstv %s133
    %v518 = vadd.f32 %v515, %v517
    %v519 = vadd.f32 %v516, %v517
    %v520 = vtanh.pop %v518
    %v521 = vtanh.pop %v519
    %v522 = vstv %s109
    %v523 = vmul.f32 %v296, %v522
    %v524 = vmul.f32 %v297, %v522
    %v525 = vstv %s114
    %v526 = vmul.f32 %v324, %v525
    %v527 = vmul.f32 %v325, %v525
    %v528 = vadd.f32 %v523, %v526
    %v529 = vadd.f32 %v524, %v527
    %v530 = vstv %s119
    %v531 = vmul.f32 %v352, %v530
    %v532 = vmul.f32 %v353, %v530
    %v533 = vadd.f32 %v528, %v531
    %v534 = vadd.f32 %v529, %v532
    %v535 = vstv %s124
    %v536 = vmul.f32 %v380, %v535
    %v537 = vmul.f32 %v381, %v535
    %v538 = vadd.f32 %v533, %v536
    %v539 = vadd.f32 %v534, %v537
    %v540 = vstv %s129
    %v541 = vmul.f32 %v408, %v540
    %v542 = vmul.f32 %v409, %v540
    %v543 = vadd.f32 %v538, %v541
    %v544 = vadd.f32 %v539, %v542
    %v545 = vstv %s134
    %v546 = vadd.f32 %v543, %v545
    %v547 = vadd.f32 %v544, %v545
    %v548 = vtanh.pop %v546
    %v549 = vtanh.pop %v547
    %v550 = vstv %s135
    %v551 = vmul.f32 %v436, %v550
    %v552 = vmul.f32 %v437, %v550
    %v553 = vstv %s140
    %v554 = vmul.f32 %v464, %v553
    %v555 = vmul.f32 %v465, %v553
    %v556 = vadd.f32 %v551, %v554
    %v557 = vadd.f32 %v552, %v555
    %v558 = vstv %s145
    %v559 = vmul.f32 %v492, %v558
    %v560 = vmul.f32 %v493, %v558
    %v561 = vadd.f32 %v556, %v559
    %v562 = vadd.f32 %v557, %v560
    %v563 = vstv %s150
    %v564 = vmul.f32 %v520, %v563
    %v565 = vmul.f32 %v521, %v563
    %v566 = vadd.f32 %v561, %v564
    %v567 = vadd.f32 %v562, %v565
    %v568 = vstv %s155
    %v569 = vmul.f32 %v548, %v568
    %v570 = vmul.f32 %v549, %v568
    %v571 = vadd.f32 %v566, %v569
    %v572 = vadd.f32 %v567, %v570
    %v573 = vstv %s160
    %v574 = vadd.f32 %v571, %v573
    %v575 = vadd.f32 %v572, %v573
    %v576 = vtanh.pop %v574
    %v577 = vtanh.pop %v575
    %v578 = vstv %s136
    %v579 = vmul.f32 %v436, %v578
    %v580 = vmul.f32 %v437, %v578
    %v581 = vstv %s141
    %v582 = vmul.f32 %v464, %v581
    %v583 = vmul.f32 %v465, %v581
    %v584 = vadd.f32 %v579, %v582
    %v585 = vadd.f32 %v580, %v583
    %v586 = vstv %s146
    %v587 = vmul.f32 %v492, %v586
    %v588 = vmul.f32 %v493, %v586
    %v589 = vadd.f32 %v584, %v587
    %v590 = vadd.f32 %v585, %v588
    %v591 = vstv %s151
    %v592 = vmul.f32 %v520, %v591
    %v593 = vmul.f32 %v521, %v591
    %v594 = vadd.f32 %v589, %v592
    %v595 = vadd.f32 %v590, %v593
    %v596 = vstv %s156
    %v597 = vmul.f32 %v548, %v596
    %v598 = vmul.f32 %v549, %v596
    %v599 = vadd.f32 %v594, %v597
    %v600 = vadd.f32 %v595, %v598
    %v601 = vstv %s161
    %v602 = vadd.f32 %v599, %v601
    %v603 = vadd.f32 %v600, %v601
    %v604 = vtanh.pop %v602
    %v605 = vtanh.pop %v603
    %v606 = vstv %s137
    %v607 = vmul.f32 %v436, %v606
    %v608 = vmul.f32 %v437, %v606
    %v609 = vstv %s142
    %v610 = vmul.f32 %v464, %v609
    %v611 = vmul.f32 %v465, %v609
    %v612 = vadd.f32 %v607, %v610
    %v613 = vadd.f32 %v608, %v611
    %v614 = vstv %s147
    %v615 = vmul.f32 %v492, %v614
    %v616 = vmul.f32 %v493, %v614
    %v617 = vadd.f32 %v612, %v615
    %v618 = vadd.f32 %v613, %v616
    %v619 = vstv %s152
    %v620 = vmul.f32 %v520, %v619
    %v621 = vmul.f32 %v521, %v619
    %v622 = vadd.f32 %v617, %v620
    %v623 = vadd.f32 %v618, %v621
    %v624 = vstv %s157
    %v625 = vmul.f32 %v548, %v624
    %v626 = vmul.f32 %v549, %v624
    %v627 = vadd.f32 %v622, %v625
    %v628 = vadd.f32 %v623, %v626
    %v629 = vstv %s162
    %v630 = vadd.f32 %v627, %v629
    %v631 = vadd.f32 %v628, %v629
    %v632 = vtanh.pop %v630
    %v633 = vtanh.pop %v631
    %v634 = vstv %s138
    %v635 = vmul.f32 %v436, %v634
    %v636 = vmul.f32 %v437, %v634
    %v637 = vstv %s143
    %v638 = vmul.f32 %v464, %v637
    %v639 = vmul.f32 %v465, %v637
    %v640 = vadd.f32 %v635, %v638
    %v641 = vadd.f32 %v636, %v639
    %v642 = vstv %s148
    %v643 = vmul.f32 %v492, %v642
    %v644 = vmul.f32 %v493, %v642
    %v645 = vadd.f32 %v640, %v643
    %v646 = vadd.f32 %v641, %v644
    %v647 = vstv %s153
    %v648 = vmul.f32 %v520, %v647
    %v649 = vmul.f32 %v521, %v647
    %v650 = vadd.f32 %v645, %v648
    %v651 = vadd.f32 %v646, %v649
    %v652 = vstv %s158
    %v653 = vmul.f32 %v548, %v652
    %v654 = vmul.f32 %v549, %v652
    %v655 = vadd.f32 %v650, %v653
    %v656 = vadd.f32 %v651, %v654
    %v657 = vstv %s163
    %v658 = vadd.f32 %v655, %v657
    %v659 = vadd.f32 %v656, %v657
    %v660 = vtanh.pop %v658
    %v661 = vtanh.pop %v659
    %v662 = vstv %s139
    %v663 = vmul.f32 %v436, %v662
    %v664 = vmul.f32 %v437, %v662
    %v665 = vstv %s144
    %v666 = vmul.f32 %v464, %v665
    %v667 = vmul.f32 %v465, %v665
    %v668 = vadd.f32 %v663, %v666
    %v669 = vadd.f32 %v664, %v667
    %v670 = vstv %s149
    %v671 = vmul.f32 %v492, %v670
    %v672 = vmul.f32 %v493, %v670
    %v673 = vadd.f32 %v668, %v671
    %v674 = vadd.f32 %v669, %v672
    %v675 = vstv %s154
    %v676 = vmul.f32 %v520, %v675
    %v677 = vmul.f32 %v521, %v675
    %v678 = vadd.f32 %v673, %v676
    %v679 = vadd.f32 %v674, %v677
    %v680 = vstv %s159
    %v681 = vmul.f32 %v548, %v680
    %v682 = vmul.f32 %v549, %v680
    %v683 = vadd.f32 %v678, %v681
    %v684 = vadd.f32 %v679, %v682
    %v685 = vstv %s164
    %v686 = vadd.f32 %v683, %v685
    %v687 = vadd.f32 %v684, %v685
    %v688 = vtanh.pop %v686
    %v689 = vtanh.pop %v687
    %v690 = vstv %s165
    %v691 = vmul.f32 %v576, %v690
    %v692 = vmul.f32 %v577, %v690
    %v693 = vstv %s170
    %v694 = vmul.f32 %v604, %v693
    %v695 = vmul.f32 %v605, %v693
    %v696 = vadd.f32 %v691, %v694
    %v697 = vadd.f32 %v692, %v695
    %v698 = vstv %s175
    %v699 = vmul.f32 %v632, %v698
    %v700 = vmul.f32 %v633, %v698
    %v701 = vadd.f32 %v696, %v699
    %v702 = vadd.f32 %v697, %v700
    %v703 = vstv %s180
    %v704 = vmul.f32 %v660, %v703
    %v705 = vmul.f32 %v661, %v703
    %v706 = vadd.f32 %v701, %v704
    %v707 = vadd.f32 %v702, %v705
    %v708 = vstv %s185
    %v709 = vmul.f32 %v688, %v708
    %v710 = vmul.f32 %v689, %v708
    %v711 = vadd.f32 %v706, %v709
    %v712 = vadd.f32 %v707, %v710
    %v713 = vstv %s190
    %v714 = vadd.f32 %v711, %v713
    %v715 = vadd.f32 %v712, %v713
    %v716 = vtanh.pop %v714
    %v717 = vtanh.pop %v715
    %v718 = vstv %s166
    %v719 = vmul.f32 %v576, %v718
    %v720 = vmul.f32 %v577, %v718
    %v721 = vstv %s171
    %v722 = vmul.f32 %v604, %v721
    %v723 = vmul.f32 %v605, %v721
    %v724 = vadd.f32 %v719, %v722
    %v725 = vadd.f32 %v720, %v723
    %v726 = vstv %s176
    %v727 = vmul.f32 %v632, %v726
    %v728 = vmul.f32 %v633, %v726
    %v729 = vadd.f32 %v724, %v727
    %v730 = vadd.f32 %v725, %v728
    %v731 = vstv %s181
    %v732 = vmul.f32 %v660, %v731
    %v733 = vmul.f32 %v661, %v731
    %v734 = vadd.f32 %v729, %v732
    %v735 = vadd.f32 %v730, %v733
    %v736 = vstv %s186
    %v737 = vmul.f32 %v688, %v736
    %v738 = vmul.f32 %v689, %v736
    %v739 = vadd.f32 %v734, %v737
    %v740 = vadd.f32 %v735, %v738
    %v741 = vstv %s191
    %v742 = vadd.f32 %v739, %v741
    %v743 = vadd.f32 %v740, %v741
    %v744 = vtanh.pop %v742
    %v745 = vtanh.pop %v743
    %v746 = vstv %s167
    %v747 = vmul.f32 %v576, %v746
    %v748 = vmul.f32 %v577, %v746
    %v749 = vstv %s172
    %v750 = vmul.f32 %v604, %v749
    %v751 = vmul.f32 %v605, %v749
    %v752 = vadd.f32 %v747, %v750
    %v753 = vadd.f32 %v748, %v751
    %v754 = vstv %s177
    %v755 = vmul.f32 %v632, %v754
    %v756 = vmul.f32 %v633, %v754
    %v757 = vadd.f32 %v752, %v755
    %v758 = vadd.f32 %v753, %v756
    %v759 = vstv %s182
    %v760 = vmul.f32 %v660, %v759
    %v761 = vmul.f32 %v661, %v759
    %v762 = vadd.f32 %v757, %v760
    %v763 = vadd.f32 %v758, %v761
    %v764 = vstv %s187
    %v765 = vmul.f32 %v688, %v764
    %v766 = vmul.f32 %v689, %v764
    %v767 = vadd.f32 %v762, %v765
    %v768 = vadd.f32 %v763, %v766
    %v769 = vstv %s192
    %v770 = vadd.f32 %v767, %v769
    %v771 = vadd.f32 %v768, %v769
    %v772 = vtanh.pop %v770
    %v773 = vtanh.pop %v771
    %v774 = vstv %s168
    %v775 = vmul.f32 %v576, %v774
    %v776 = vmul.f32 %v577, %v774
    %v777 = vstv %s173
    %v778 = vmul.f32 %v604, %v777
    %v779 = vmul.f32 %v605, %v777
    %v780 = vadd.f32 %v775, %v778
    %v781 = vadd.f32 %v776, %v779
    %v782 = vstv %s178
    %v783 = vmul.f32 %v632, %v782
    %v784 = vmul.f32 %v633, %v782
    %v785 = vadd.f32 %v780, %v783
    %v786 = vadd.f32 %v781, %v784
    %v787 = vstv %s183
    %v788 = vmul.f32 %v660, %v787
    %v789 = vmul.f32 %v661, %v787
    %v790 = vadd.f32 %v785, %v788
    %v791 = vadd.f32 %v786, %v789
    %v792 = vstv %s188
    %v793 = vmul.f32 %v688, %v792
    %v794 = vmul.f32 %v689, %v792
    %v795 = vadd.f32 %v790, %v793
    %v796 = vadd.f32 %v791, %v794
    %v797 = vstv %s193
    %v798 = vadd.f32 %v795, %v797
    %v799 = vadd.f32 %v796, %v797
    %v800 = vtanh.pop %v798
    %v801 = vtanh.pop %v799
    %v802 = vstv %s169
    %v803 = vmul.f32 %v576, %v802
    %v804 = vmul.f32 %v577, %v802
    %v805 = vstv %s174
    %v806 = vmul.f32 %v604, %v805
    %v807 = vmul.f32 %v605, %v805
    %v808 = vadd.f32 %v803, %v806
    %v809 = vadd.f32 %v804, %v807
    %v810 = vstv %s179
    %v811 = vmul.f32 %v632, %v810
    %v812 = vmul.f32 %v633, %v810
    %v813 = vadd.f32 %v808, %v811
    %v814 = vadd.f32 %v809, %v812
    %v815 = vstv %s184
    %v816 = vmul.f32 %v660, %v815
    %v817 = vmul.f32 %v661, %v815
    %v818 = vadd.f32 %v813, %v816
    %v819 = vadd.f32 %v814, %v817
    %v820 = vstv %s189
    %v821 = vmul.f32 %v688, %v820
    %v822 = vmul.f32 %v689, %v820
    %v823 = vadd.f32 %v818, %v821
    %v824 = vadd.f32 %v819, %v822
    %v825 = vstv %s194
    %v826 = vadd.f32 %v823, %v825
    %v827 = vadd.f32 %v824, %v825
    %v828 = vtanh.pop %v826
    %v829 = vtanh.pop %v827
    %v830 = vstv %s195
    %v831 = vmul.f32 %v716, %v830
    %v832 = vmul.f32 %v717, %v830
    %v833 = vstv %s196
    %v834 = vmul.f32 %v744, %v833
    %v835 = vmul.f32 %v745, %v833
    %v836 = vadd.f32 %v831, %v834
    %v837 = vadd.f32 %v832, %v835
    %v838 = vstv %s197
    %v839 = vmul.f32 %v772, %v838
    %v840 = vmul.f32 %v773, %v838
    %v841 = vadd.f32 %v836, %v839
    %v842 = vadd.f32 %v837, %v840
    %v843 = vstv %s198
    %v844 = vmul.f32 %v800, %v843
    %v845 = vmul.f32 %v801, %v843
    %v846 = vadd.f32 %v841, %v844
    %v847 = vadd.f32 %v842, %v845
    %v848 = vstv %s199
    %v849 = vmul.f32 %v828, %v848
    %v850 = vmul.f32 %v829, %v848
    %v851 = vadd.f32 %v846, %v849
    %v852 = vadd.f32 %v847, %v850
    %v853 = vstv %s200
    %v854 = vadd.f32 %v851, %v853
    %v855 = vadd.f32 %v852, %v853
    %856 = vst [vmem:[#allocation9] sm:$0xff] %v854
    %857 = vst [vmem:[#allocation9 + $0x8] sm:$0xff] %v855
    // Predicated region
    $region26: #{tpu_custom_call.1} parent=1 // pred_check
      _
    $region27: #{tpu_custom_call.1} parent=1 // pred_check_branch
      %859 = sbr.rel (0) target = $region29
    $region28: #{tpu_custom_call.1} parent=1 // pred_region
      %861 = vsyncadd [#allocation4], 0
      %s862 = sshll.u32 [#allocation9], 4
      %s863 = int_to_ptr.vmem [resolvable:$true] %s862
      %s864 = sshll.u32 %s3, 4
      %s865 = int_to_ptr.hbm [resolvable:$true] %s864
      %870 = dma.vmem_to_hbm [thread:$0]  %s863, 256, %s865, [#allocation4], 128, 128, 8
    $region29: #{tpu_custom_call.1} parent=1 // pred_fallthru
      _
    // Predicated region
    $region30: #{tpu_custom_call.1} parent=1 // pred_check
      _
    $region31: #{tpu_custom_call.1} parent=1 // pred_check_branch
      %872 = sbr.rel (0) target = $region33
    $region32: #{tpu_custom_call.1} parent=1 // pred_region
      %874 = dma.done [#allocation4], 256
    $region33: #{tpu_custom_call.1} parent=1 // pred_fallthru
      _
    %875 = vsyncpa [#allocation3], 1
    %876 = vsyncpa [#allocation8], 1
    %877 = vsyncpa [#allocation4], 1
    %878 = vsyncpa [#allocation5], 1

</llo_original>
